<compile_context>
chip_gen: v5e
topology: v5e:2x2
jax: 0.10.0
libtpu: 0.0.40
codegen_flags: <defaults>
</compile_context>

<pallas_src>
import numpy as np
import jax
import jax.numpy as jnp
from jax.experimental import pallas as pl
from jax.experimental.pallas import tpu as pltpu

# ---- model dims (small shapes consistent with HyperMem's forward) ----
B = 8          # batch of embedded visual examples
LM_DIM = 64    # lm_dim   (CLIP text embedding width)
KNOB = 32      # knob_dim (conditioning vector width)
IN_DIM = 64    # input_dim
HID = 32       # hidden_dim
LAT = 16       # output_dim  (the module's undefined `latent_dim` == output_dim)

# (in_dim, out_dim) of the four HyperMLPs inside HyperEncoder
MLP_DIMS = [(IN_DIM, 2 * HID), (2 * HID, HID), (HID, 2 * HID), (2 * HID, LAT)]
DIN_MAX = max(d for d, _ in MLP_DIMS)              # 64 = rows of the generated slab

# generated-weight slab layout: wt_s (64, 176); column offset of each Wt_i = W_i^T
W_OFFS = [0, 128, 64, 160]
SLAB_COLS = 176                                    # 64 + 32 + 64 + 16 (tight)

# slab produced by an (NBLK, NBLK*KNOB) @ (NBLK*KNOB, NBLK*SLAB_COLS) matmul:
#   matmul row r, column block s  <->  slab row j = s*ROWS_PER_BLK + r
NBLK = 8
ROWS_PER_BLK = DIN_MAX // NBLK                     # 8
GEN_K = NBLK * KNOB                                # 256  (contraction dim)
GEN_N = NBLK * SLAB_COLS                           # 1408

# filter / centroid / 4 generated bias rows packed into one (KNOB, 256) matmul
S_OFFS = {"f": 0, "c": 64, "b1": 80, "b2": 144, "b3": 176, "b4": 240}
S_WIDTH = {"f": IN_DIM, "c": LAT, "b1": 2 * HID, "b2": HID, "b3": 2 * HID, "b4": LAT}
SMALL_COLS = 256

_SQRT_2_OVER_PI = 0.7978845608028654


def _gelu_tanh(x):
    # tanh-approx GELU: the transcendental goes to the EUP slot; deviation from torch's
    # exact-erf default is <1e-4 for the activation magnitudes seen here.
    return 0.5 * x * (1.0 + jnp.tanh(_SQRT_2_OVER_PI * (x + 0.044715 * x * x * x)))


# ---------------- the single fused kernel ----------------
def fused_hypermem_kernel(e_raw_ref, w12r_ref, b12r_ref, mask8_ref,
                          smallw_ref, smallb_ref, d8_ref, bias8_ref, x_ref,
                          z_ref, c_ref, wt_s):
    f32 = jnp.float32

    # 1) conditioning: embedding[0] o embedding[1] fused offline into one matmul, with
    #    the x8 lane replication (needed by the block-diagonal LHS below) folded in as
    #    well -- replication commutes with the elementwise ReLU.
    e_rep = jnp.maximum(
        jnp.dot(e_raw_ref[...], w12r_ref[...], preferred_element_type=f32)
        + b12r_ref[...], 0.0)                               # (1, 256): e tiled 8x
    e = e_rep[:, :KNOB]                                     # (1, 32)

    # 2a) filter / centroid / generated bias rows: one tight (1,32)@(32,256) f32 matmul.
    small = jnp.dot(e, smallw_ref[...], preferred_element_type=f32) + smallb_ref[...]
    f_row = small[:, S_OFFS["f"]:S_OFFS["f"] + IN_DIM]       # (1, 64)
    c_row = small[:, S_OFFS["c"]:S_OFFS["c"] + LAT]          # (1, 16)
    b1 = small[:, S_OFFS["b1"]:S_OFFS["b1"] + 2 * HID]       # (1, 64)
    b2 = small[:, S_OFFS["b2"]:S_OFFS["b2"] + HID]           # (1, 32)
    b3 = small[:, S_OFFS["b3"]:S_OFFS["b3"] + 2 * HID]       # (1, 64)
    b4 = small[:, S_OFFS["b4"]:S_OFFS["b4"] + LAT]           # (1, 16)

    # 2b) all four generated weight matrices from ONE (8,256)@(256,1408) bf16 matmul.
    #     LHS = I_8 (x) e, built from a tiny precomputed 0/1 mask: 2 vregs of f32
    #     multiply + a 1-2-vreg bf16 cast -- no iotas / compares / spills, no redundant
    #     MXU work.  The row-major "reshape" into the (64, 176) slab is realized with
    #     8 contiguous block stores into VMEM scratch.
    lhs = (mask8_ref[...] * e_rep).astype(jnp.bfloat16)      # (8, 256)
    wt8 = jnp.dot(lhs, d8_ref[...], preferred_element_type=f32) + bias8_ref[...]  # (8,1408) f32
    for s in range(NBLK):
        wt_s[s * ROWS_PER_BLK:(s + 1) * ROWS_PER_BLK, :] = \
            wt8[:, s * SLAB_COLS:(s + 1) * SLAB_COLS]

    wt1 = wt_s[:, W_OFFS[0]:W_OFFS[0] + 2 * HID]             # (64, 64)
    wt2 = wt_s[:, W_OFFS[1]:W_OFFS[1] + HID]                 # (64, 32)
    wt3 = wt_s[0:HID, W_OFFS[2]:W_OFFS[2] + 2 * HID]         # (32, 64)
    wt4 = wt_s[:, W_OFFS[3]:W_OFFS[3] + LAT]                 # (64, 16)

    # 3) h = x * filter(e)  +  HyperEncoder (4 generated linears, GELU, residual)
    h = x_ref[...] * f_row
    h1 = _gelu_tanh(jnp.dot(h, wt1, preferred_element_type=f32) + b1)
    h2 = _gelu_tanh(jnp.dot(h1, wt2, preferred_element_type=f32) + b2)
    h3 = _gelu_tanh(jnp.dot(h2, wt3, preferred_element_type=f32) + b3) + h1
    z_ref[...] = _gelu_tanh(jnp.dot(h3, wt4, preferred_element_type=f32) + b4)
    c_ref[...] = c_row


# ---------------- parameter init (torch layout) ----------------
def init_raw_params(key):
    ks = jax.random.split(key, 16)
    idx = 0

    def lin(out_f, in_f):
        nonlocal idx
        kw, kb = jax.random.split(ks[idx]); idx += 1
        bound = 1.0 / np.sqrt(in_f)
        w = jax.random.uniform(kw, (out_f, in_f), jnp.float32, -bound, bound)
        b = jax.random.uniform(kb, (out_f,), jnp.float32, -bound, bound)
        return w, b

    raw = {}
    raw["we1"], raw["be1"] = lin(LM_DIM, LM_DIM)   # embedding[0]
    raw["we2"], raw["be2"] = lin(KNOB, LM_DIM)     # embedding[1]
    raw["wf"], raw["bf"] = lin(IN_DIM, KNOB)       # self.filter
    raw["wc"], raw["bc"] = lin(LAT, KNOB)          # self.centroid
    raw["mlps"] = []
    for din, dout in MLP_DIMS:                     # each HyperMLP: ff then b
        wff, bff = lin(din * dout, KNOB)
        wb, bb = lin(dout, KNOB)
        raw["mlps"].append((wff, bff, wb, bb))
    return raw


# ---------------- one-time re-layout of params into kernel-consumed form ----------------
def prepare_params(raw):
    we1 = np.asarray(raw["we1"]); be1 = np.asarray(raw["be1"])
    we2 = np.asarray(raw["we2"]); be2 = np.asarray(raw["be2"])
    # fuse embedding[0] o embedding[1] (no nonlinearity between), fold in x NBLK
    # lane replication (replication commutes with the later ReLU).
    w12 = we1.T @ we2.T                                  # (64, 32)
    b12 = be1 @ we2.T + be2                              # (32,)
    w12_rep = np.tile(w12, (1, NBLK))                    # (64, 256)
    b12_rep = np.tile(b12, NBLK).reshape(1, -1)          # (1, 256)

    # block-diagonal selector: mask8[r, q] = 1  iff  q // KNOB == r
    mask8 = np.zeros((NBLK, GEN_K), np.float32)
    for r in range(NBLK):
        mask8[r, r * KNOB:(r + 1) * KNOB] = 1.0

    small_w = np.zeros((KNOB, SMALL_COLS), np.float32)
    small_b = np.zeros((1, SMALL_COLS), np.float32)

    def place(name, w, b):
        off, width = S_OFFS[name], S_WIDTH[name]
        small_w[:, off:off + width] = np.asarray(w).T
        small_b[0, off:off + width] = np.asarray(b)

    place("f", raw["wf"], raw["bf"])
    place("c", raw["wc"], raw["bc"])

    # hyper-generated weight slab, packed for the (8,256)@(256,1408) matmul:
    #   d8[r*KNOB + k, s*SLAB_COLS + off_i + o] = wff_i[o*din_i + j, k]   with j = s*8 + r
    # so that  wt8[r, s*SLAB_COLS + off_i + o] = W_i[o, j] = Wt_i[j, o]
    # (preserves torch's `.view(out_dim, in_dim)` transpose).
    d8 = np.zeros((GEN_K, GEN_N), np.float32)
    bias8 = np.zeros((NBLK, GEN_N), np.float32)
    for i, ((din, dout), (wff, bff, wb, bb)) in enumerate(zip(MLP_DIMS, raw["mlps"])):
        place(f"b{i + 1}", wb, bb)
        off = W_OFFS[i]
        wff = np.asarray(wff)                            # (din*dout, KNOB)
        bff = np.asarray(bff)                            # (din*dout,)
        for j in range(din):
            s, r = j // ROWS_PER_BLK, j % ROWS_PER_BLK
            col0 = s * SLAB_COLS + off
            d8[r * KNOB:(r + 1) * KNOB, col0:col0 + dout] = wff[j::din, :].T
            bias8[r, col0:col0 + dout] = bff[j::din]

    return dict(
        w12_rep=jnp.asarray(w12_rep),
        b12_rep=jnp.asarray(b12_rep),
        mask8=jnp.asarray(mask8),
        small_w=jnp.asarray(small_w),
        small_b=jnp.asarray(small_b),
        d8=jnp.asarray(d8, dtype=jnp.bfloat16),          # dominant HBM stream in bf16
        bias8=jnp.asarray(bias8),
    )


# ---------------- jitted forward: one pallas_call, one dispatch ----------------
@jax.jit
def hypermem_forward(prep, e_notion_raw, x):
    z, c = pl.pallas_call(
        fused_hypermem_kernel,
        out_shape=(jax.ShapeDtypeStruct((B, LAT), jnp.float32),
                   jax.ShapeDtypeStruct((1, LAT), jnp.float32)),
        scratch_shapes=[pltpu.VMEM((DIN_MAX, SLAB_COLS), jnp.float32)],
    )(e_notion_raw, prep["w12_rep"], prep["b12_rep"], prep["mask8"],
      prep["small_w"], prep["small_b"], prep["d8"], prep["bias8"], x)
    return z, c


# ---------------- pure-JAX reference (torch semantics, f32, exact-erf GELU) ----------------
def reference_forward(raw, e_raw, x):
    lin = lambda v, w, b: v @ w.T + b
    gelu = lambda v: 0.5 * v * (1.0 + jax.scipy.special.erf(v / np.sqrt(2.0)))
    e = jnp.maximum(lin(lin(e_raw, raw["we1"], raw["be1"]), raw["we2"], raw["be2"]), 0.0)
    k = e.reshape(-1)
    f = lin(e, raw["wf"], raw["bf"])
    c = lin(e, raw["wc"], raw["bc"])
    gen = []
    for (din, dout), (wff, bff, wb, bb) in zip(MLP_DIMS, raw["mlps"]):
        w = (wff @ k + bff).reshape(dout, din)   # == torch .view(out_dim, in_dim)
        bvec = wb @ k + bb
        gen.append((w, bvec))
    (w1, b1), (w2, b2), (w3, b3), (w4, b4) = gen
    h = x * f
    h1 = gelu(h @ w1.T + b1)
    h2 = gelu(h1 @ w2.T + b2)
    h3 = gelu(h2 @ w3.T + b3) + h1
    z = gelu(h3 @ w4.T + b4)
    return z, c


if __name__ == "__main__":
    key = jax.random.PRNGKey(0)
    k_par, k_e, k_x = jax.random.split(key, 3)
    raw = init_raw_params(k_par)
    prep = prepare_params(raw)

    # TODO(synk): clip.tokenize + clip_model.encode_text (frozen CLIP) have no Pallas
    # equivalent; substitute a deterministic stand-in text embedding of shape (1, lm_dim).
    e_notion_raw = jax.random.normal(k_e, (1, LM_DIM), jnp.float32)
    x = jax.random.normal(k_x, (B, IN_DIM), jnp.float32)

    z, c = hypermem_forward(prep, e_notion_raw, x)
    jax.block_until_ready((z, c))

    z_ref, c_ref = reference_forward(raw, e_notion_raw, x)
    np.testing.assert_allclose(np.asarray(z), np.asarray(z_ref), rtol=5e-2, atol=5e-2)
    np.testing.assert_allclose(np.asarray(c), np.asarray(c_ref), rtol=5e-2, atol=5e-2)
    print("KERNEL_OK")
</pallas_src>

<mosaic_0001>
module attributes {stable_mosaic.version = 11 : i64} {
  func.func @fused_hypermem_kernel(%arg0: memref<1x64xf32, #tpu.memory_space<vmem>>, %arg1: memref<64x256xf32, #tpu.memory_space<vmem>>, %arg2: memref<1x256xf32, #tpu.memory_space<vmem>>, %arg3: memref<8x256xf32, #tpu.memory_space<vmem>>, %arg4: memref<32x256xf32, #tpu.memory_space<vmem>>, %arg5: memref<1x256xf32, #tpu.memory_space<vmem>>, %arg6: memref<256x1408xbf16, #tpu.memory_space<vmem>>, %arg7: memref<8x1408xf32, #tpu.memory_space<vmem>>, %arg8: memref<8x64xf32, #tpu.memory_space<vmem>>, %arg9: memref<8x16xf32, #tpu.memory_space<vmem>>, %arg10: memref<1x16xf32, #tpu.memory_space<vmem>>, %arg11: memref<64x176xf32, #tpu.memory_space<vmem>>) attributes {dimension_semantics = [], scalar_prefetch = 0 : i64, scratch_operands = 1 : i64, tpu.core_type = #tpu.core_type<tc>} {
    %c0 = arith.constant 0 : index
    %c0_0 = arith.constant 0 : index
    %0 = vector.load %arg0[%c0, %c0_0] : memref<1x64xf32, #tpu.memory_space<vmem>>, vector<1x64xf32>
    %c0_1 = arith.constant 0 : index
    %c0_2 = arith.constant 0 : index
    %1 = vector.load %arg1[%c0_1, %c0_2] : memref<64x256xf32, #tpu.memory_space<vmem>>, vector<64x256xf32>
    %cst = arith.constant dense<0.000000e+00> : vector<1x256xf32>
    %2 = tpu.matmul %0, %1, %cst {dimension_numbers = #tpu.dot_dimension_numbers<[1], [0], [0], [1], [0, 0, 1, 1], [], []>} : vector<1x64xf32>, vector<64x256xf32>, vector<1x256xf32> -> vector<1x256xf32>
    %c0_3 = arith.constant 0 : index
    %c0_4 = arith.constant 0 : index
    %3 = vector.load %arg2[%c0_3, %c0_4] : memref<1x256xf32, #tpu.memory_space<vmem>>, vector<1x256xf32>
    %4 = arith.addf %2, %3 : vector<1x256xf32>
    %cst_5 = arith.constant 0.000000e+00 : f32
    %5 = vector.broadcast %cst_5 : f32 to vector<1x256xf32>
    %6 = arith.maximumf %4, %5 : vector<1x256xf32>
    %7 = vector.extract_strided_slice %6 {offsets = [0, 0], sizes = [1, 32], strides = [1, 1]} : vector<1x256xf32> to vector<1x32xf32>
    %c0_6 = arith.constant 0 : index
    %c0_7 = arith.constant 0 : index
    %8 = vector.load %arg4[%c0_6, %c0_7] : memref<32x256xf32, #tpu.memory_space<vmem>>, vector<32x256xf32>
    %cst_8 = arith.constant dense<0.000000e+00> : vector<1x256xf32>
    %9 = tpu.matmul %7, %8, %cst_8 {dimension_numbers = #tpu.dot_dimension_numbers<[1], [0], [0], [1], [0, 0, 1, 1], [], []>} : vector<1x32xf32>, vector<32x256xf32>, vector<1x256xf32> -> vector<1x256xf32>
    %c0_9 = arith.constant 0 : index
    %c0_10 = arith.constant 0 : index
    %10 = vector.load %arg5[%c0_9, %c0_10] : memref<1x256xf32, #tpu.memory_space<vmem>>, vector<1x256xf32>
    %11 = arith.addf %9, %10 : vector<1x256xf32>
    %12 = vector.extract_strided_slice %11 {offsets = [0, 0], sizes = [1, 64], strides = [1, 1]} : vector<1x256xf32> to vector<1x64xf32>
    %13 = vector.extract_strided_slice %11 {offsets = [0, 64], sizes = [1, 16], strides = [1, 1]} : vector<1x256xf32> to vector<1x16xf32>
    %14 = vector.extract_strided_slice %11 {offsets = [0, 80], sizes = [1, 64], strides = [1, 1]} : vector<1x256xf32> to vector<1x64xf32>
    %15 = vector.extract_strided_slice %11 {offsets = [0, 144], sizes = [1, 32], strides = [1, 1]} : vector<1x256xf32> to vector<1x32xf32>
    %16 = vector.extract_strided_slice %11 {offsets = [0, 176], sizes = [1, 64], strides = [1, 1]} : vector<1x256xf32> to vector<1x64xf32>
    %17 = vector.extract_strided_slice %11 {offsets = [0, 240], sizes = [1, 16], strides = [1, 1]} : vector<1x256xf32> to vector<1x16xf32>
    %c0_11 = arith.constant 0 : index
    %c0_12 = arith.constant 0 : index
    %18 = vector.load %arg3[%c0_11, %c0_12] : memref<8x256xf32, #tpu.memory_space<vmem>>, vector<8x256xf32>
    %19 = vector.broadcast %6 : vector<1x256xf32> to vector<8x256xf32>
    %20 = arith.mulf %18, %19 : vector<8x256xf32>
    %21 = arith.truncf %20 : vector<8x256xf32> to vector<8x256xbf16>
    %c0_13 = arith.constant 0 : index
    %c0_14 = arith.constant 0 : index
    %22 = vector.load %arg6[%c0_13, %c0_14] : memref<256x1408xbf16, #tpu.memory_space<vmem>>, vector<256x1408xbf16>
    %cst_15 = arith.constant dense<0.000000e+00> : vector<8x1408xf32>
    %23 = tpu.matmul %21, %22, %cst_15 {dimension_numbers = #tpu.dot_dimension_numbers<[1], [0], [0], [1], [0, 0, 1, 1], [], []>} : vector<8x256xbf16>, vector<256x1408xbf16>, vector<8x1408xf32> -> vector<8x1408xf32>
    %c0_16 = arith.constant 0 : index
    %c0_17 = arith.constant 0 : index
    %24 = vector.load %arg7[%c0_16, %c0_17] : memref<8x1408xf32, #tpu.memory_space<vmem>>, vector<8x1408xf32>
    %25 = arith.addf %23, %24 : vector<8x1408xf32>
    %26 = vector.extract_strided_slice %25 {offsets = [0, 0], sizes = [8, 176], strides = [1, 1]} : vector<8x1408xf32> to vector<8x176xf32>
    %c0_18 = arith.constant 0 : index
    %c0_19 = arith.constant 0 : index
    %27 = vector.load %arg11[%c0_18, %c0_19] : memref<64x176xf32, #tpu.memory_space<vmem>>, vector<8x176xf32>
    tpu.vector_store %arg11[%c0_18, %c0_19], %26 {strides = array<i32>} : memref<64x176xf32, #tpu.memory_space<vmem>>, vector<8x176xf32>,
    %28 = vector.extract_strided_slice %25 {offsets = [0, 176], sizes = [8, 176], strides = [1, 1]} : vector<8x1408xf32> to vector<8x176xf32>
    %c8 = arith.constant 8 : index
    %c0_20 = arith.constant 0 : index
    %29 = vector.load %arg11[%c8, %c0_20] : memref<64x176xf32, #tpu.memory_space<vmem>>, vector<8x176xf32>
    tpu.vector_store %arg11[%c8, %c0_20], %28 {strides = array<i32>} : memref<64x176xf32, #tpu.memory_space<vmem>>, vector<8x176xf32>,
    %30 = vector.extract_strided_slice %25 {offsets = [0, 352], sizes = [8, 176], strides = [1, 1]} : vector<8x1408xf32> to vector<8x176xf32>
    %c16 = arith.constant 16 : index
    %c0_21 = arith.constant 0 : index
    %31 = vector.load %arg11[%c16, %c0_21] : memref<64x176xf32, #tpu.memory_space<vmem>>, vector<8x176xf32>
    tpu.vector_store %arg11[%c16, %c0_21], %30 {strides = array<i32>} : memref<64x176xf32, #tpu.memory_space<vmem>>, vector<8x176xf32>,
    %32 = vector.extract_strided_slice %25 {offsets = [0, 528], sizes = [8, 176], strides = [1, 1]} : vector<8x1408xf32> to vector<8x176xf32>
    %c24 = arith.constant 24 : index
    %c0_22 = arith.constant 0 : index
    %33 = vector.load %arg11[%c24, %c0_22] : memref<64x176xf32, #tpu.memory_space<vmem>>, vector<8x176xf32>
    tpu.vector_store %arg11[%c24, %c0_22], %32 {strides = array<i32>} : memref<64x176xf32, #tpu.memory_space<vmem>>, vector<8x176xf32>,
    %34 = vector.extract_strided_slice %25 {offsets = [0, 704], sizes = [8, 176], strides = [1, 1]} : vector<8x1408xf32> to vector<8x176xf32>
    %c32 = arith.constant 32 : index
    %c0_23 = arith.constant 0 : index
    %35 = vector.load %arg11[%c32, %c0_23] : memref<64x176xf32, #tpu.memory_space<vmem>>, vector<8x176xf32>
    tpu.vector_store %arg11[%c32, %c0_23], %34 {strides = array<i32>} : memref<64x176xf32, #tpu.memory_space<vmem>>, vector<8x176xf32>,
    %36 = vector.extract_strided_slice %25 {offsets = [0, 880], sizes = [8, 176], strides = [1, 1]} : vector<8x1408xf32> to vector<8x176xf32>
    %c40 = arith.constant 40 : index
    %c0_24 = arith.constant 0 : index
    %37 = vector.load %arg11[%c40, %c0_24] : memref<64x176xf32, #tpu.memory_space<vmem>>, vector<8x176xf32>
    tpu.vector_store %arg11[%c40, %c0_24], %36 {strides = array<i32>} : memref<64x176xf32, #tpu.memory_space<vmem>>, vector<8x176xf32>,
    %38 = vector.extract_strided_slice %25 {offsets = [0, 1056], sizes = [8, 176], strides = [1, 1]} : vector<8x1408xf32> to vector<8x176xf32>
    %c48 = arith.constant 48 : index
    %c0_25 = arith.constant 0 : index
    %39 = vector.load %arg11[%c48, %c0_25] : memref<64x176xf32, #tpu.memory_space<vmem>>, vector<8x176xf32>
    tpu.vector_store %arg11[%c48, %c0_25], %38 {strides = array<i32>} : memref<64x176xf32, #tpu.memory_space<vmem>>, vector<8x176xf32>,
    %40 = vector.extract_strided_slice %25 {offsets = [0, 1232], sizes = [8, 176], strides = [1, 1]} : vector<8x1408xf32> to vector<8x176xf32>
    %c56 = arith.constant 56 : index
    %c0_26 = arith.constant 0 : index
    %41 = vector.load %arg11[%c56, %c0_26] : memref<64x176xf32, #tpu.memory_space<vmem>>, vector<8x176xf32>
    tpu.vector_store %arg11[%c56, %c0_26], %40 {strides = array<i32>} : memref<64x176xf32, #tpu.memory_space<vmem>>, vector<8x176xf32>,
    %c0_27 = arith.constant 0 : index
    %c0_28 = arith.constant 0 : index
    %42 = vector.load %arg11[%c0_27, %c0_28] : memref<64x176xf32, #tpu.memory_space<vmem>>, vector<64x64xf32>
    %c0_29 = arith.constant 0 : index
    %c128 = arith.constant 128 : index
    %43 = vector.load %arg11[%c0_29, %c128] : memref<64x176xf32, #tpu.memory_space<vmem>>, vector<64x32xf32>
    %c0_30 = arith.constant 0 : index
    %c64 = arith.constant 64 : index
    %44 = vector.load %arg11[%c0_30, %c64] : memref<64x176xf32, #tpu.memory_space<vmem>>, vector<32x64xf32>
    %c0_31 = arith.constant 0 : index
    %c160 = arith.constant 160 : index
    %45 = vector.load %arg11[%c0_31, %c160] : memref<64x176xf32, #tpu.memory_space<vmem>>, vector<64x16xf32>
    %c0_32 = arith.constant 0 : index
    %c0_33 = arith.constant 0 : index
    %46 = vector.load %arg8[%c0_32, %c0_33] : memref<8x64xf32, #tpu.memory_space<vmem>>, vector<8x64xf32>
    %47 = vector.broadcast %12 : vector<1x64xf32> to vector<8x64xf32>
    %48 = arith.mulf %46, %47 : vector<8x64xf32>
    %cst_34 = arith.constant dense<0.000000e+00> : vector<8x64xf32>
    %49 = tpu.matmul %48, %42, %cst_34 {dimension_numbers = #tpu.dot_dimension_numbers<[1], [0], [0], [1], [0, 0, 1, 1], [], []>} : vector<8x64xf32>, vector<64x64xf32>, vector<8x64xf32> -> vector<8x64xf32>
    %50 = vector.broadcast %14 : vector<1x64xf32> to vector<8x64xf32>
    %51 = arith.addf %49, %50 : vector<8x64xf32>
    %cst_35 = arith.constant 5.000000e-01 : f32
    %52 = vector.broadcast %cst_35 : f32 to vector<8x64xf32>
    %53 = arith.mulf %52, %51 : vector<8x64xf32>
    %cst_36 = arith.constant 4.471500e-02 : f32
    %54 = vector.broadcast %cst_36 : f32 to vector<8x64xf32>
    %55 = arith.mulf %54, %51 : vector<8x64xf32>
    %56 = arith.mulf %55, %51 : vector<8x64xf32>
    %57 = arith.mulf %56, %51 : vector<8x64xf32>
    %58 = arith.addf %51, %57 : vector<8x64xf32>
    %cst_37 = arith.constant 0.797884583 : f32
    %59 = vector.broadcast %cst_37 : f32 to vector<8x64xf32>
    %60 = arith.mulf %59, %58 : vector<8x64xf32>
    %61 = math.tanh %60 : vector<8x64xf32>
    %cst_38 = arith.constant 1.000000e+00 : f32
    %62 = vector.broadcast %cst_38 : f32 to vector<8x64xf32>
    %63 = arith.addf %62, %61 : vector<8x64xf32>
    %64 = arith.mulf %53, %63 : vector<8x64xf32>
    %cst_39 = arith.constant dense<0.000000e+00> : vector<8x32xf32>
    %65 = tpu.matmul %64, %43, %cst_39 {dimension_numbers = #tpu.dot_dimension_numbers<[1], [0], [0], [1], [0, 0, 1, 1], [], []>} : vector<8x64xf32>, vector<64x32xf32>, vector<8x32xf32> -> vector<8x32xf32>
    %66 = vector.broadcast %15 : vector<1x32xf32> to vector<8x32xf32>
    %67 = arith.addf %65, %66 : vector<8x32xf32>
    %cst_40 = arith.constant 5.000000e-01 : f32
    %68 = vector.broadcast %cst_40 : f32 to vector<8x32xf32>
    %69 = arith.mulf %68, %67 : vector<8x32xf32>
    %cst_41 = arith.constant 4.471500e-02 : f32
    %70 = vector.broadcast %cst_41 : f32 to vector<8x32xf32>
    %71 = arith.mulf %70, %67 : vector<8x32xf32>
    %72 = arith.mulf %71, %67 : vector<8x32xf32>
    %73 = arith.mulf %72, %67 : vector<8x32xf32>
    %74 = arith.addf %67, %73 : vector<8x32xf32>
    %cst_42 = arith.constant 0.797884583 : f32
    %75 = vector.broadcast %cst_42 : f32 to vector<8x32xf32>
    %76 = arith.mulf %75, %74 : vector<8x32xf32>
    %77 = math.tanh %76 : vector<8x32xf32>
    %cst_43 = arith.constant 1.000000e+00 : f32
    %78 = vector.broadcast %cst_43 : f32 to vector<8x32xf32>
    %79 = arith.addf %78, %77 : vector<8x32xf32>
    %80 = arith.mulf %69, %79 : vector<8x32xf32>
    %cst_44 = arith.constant dense<0.000000e+00> : vector<8x64xf32>
    %81 = tpu.matmul %80, %44, %cst_44 {dimension_numbers = #tpu.dot_dimension_numbers<[1], [0], [0], [1], [0, 0, 1, 1], [], []>} : vector<8x32xf32>, vector<32x64xf32>, vector<8x64xf32> -> vector<8x64xf32>
    %82 = vector.broadcast %16 : vector<1x64xf32> to vector<8x64xf32>
    %83 = arith.addf %81, %82 : vector<8x64xf32>
    %cst_45 = arith.constant 5.000000e-01 : f32
    %84 = vector.broadcast %cst_45 : f32 to vector<8x64xf32>
    %85 = arith.mulf %84, %83 : vector<8x64xf32>
    %cst_46 = arith.constant 4.471500e-02 : f32
    %86 = vector.broadcast %cst_46 : f32 to vector<8x64xf32>
    %87 = arith.mulf %86, %83 : vector<8x64xf32>
    %88 = arith.mulf %87, %83 : vector<8x64xf32>
    %89 = arith.mulf %88, %83 : vector<8x64xf32>
    %90 = arith.addf %83, %89 : vector<8x64xf32>
    %cst_47 = arith.constant 0.797884583 : f32
    %91 = vector.broadcast %cst_47 : f32 to vector<8x64xf32>
    %92 = arith.mulf %91, %90 : vector<8x64xf32>
    %93 = math.tanh %92 : vector<8x64xf32>
    %cst_48 = arith.constant 1.000000e+00 : f32
    %94 = vector.broadcast %cst_48 : f32 to vector<8x64xf32>
    %95 = arith.addf %94, %93 : vector<8x64xf32>
    %96 = arith.mulf %85, %95 : vector<8x64xf32>
    %97 = arith.addf %96, %64 : vector<8x64xf32>
    %cst_49 = arith.constant dense<0.000000e+00> : vector<8x16xf32>
    %98 = tpu.matmul %97, %45, %cst_49 {dimension_numbers = #tpu.dot_dimension_numbers<[1], [0], [0], [1], [0, 0, 1, 1], [], []>} : vector<8x64xf32>, vector<64x16xf32>, vector<8x16xf32> -> vector<8x16xf32>
    %99 = vector.broadcast %17 : vector<1x16xf32> to vector<8x16xf32>
    %100 = arith.addf %98, %99 : vector<8x16xf32>
    %cst_50 = arith.constant 5.000000e-01 : f32
    %101 = vector.broadcast %cst_50 : f32 to vector<8x16xf32>
    %102 = arith.mulf %101, %100 : vector<8x16xf32>
    %cst_51 = arith.constant 4.471500e-02 : f32
    %103 = vector.broadcast %cst_51 : f32 to vector<8x16xf32>
    %104 = arith.mulf %103, %100 : vector<8x16xf32>
    %105 = arith.mulf %104, %100 : vector<8x16xf32>
    %106 = arith.mulf %105, %100 : vector<8x16xf32>
    %107 = arith.addf %100, %106 : vector<8x16xf32>
    %cst_52 = arith.constant 0.797884583 : f32
    %108 = vector.broadcast %cst_52 : f32 to vector<8x16xf32>
    %109 = arith.mulf %108, %107 : vector<8x16xf32>
    %110 = math.tanh %109 : vector<8x16xf32>
    %cst_53 = arith.constant 1.000000e+00 : f32
    %111 = vector.broadcast %cst_53 : f32 to vector<8x16xf32>
    %112 = arith.addf %111, %110 : vector<8x16xf32>
    %113 = arith.mulf %102, %112 : vector<8x16xf32>
    %c0_54 = arith.constant 0 : index
    %c0_55 = arith.constant 0 : index
    %114 = vector.load %arg9[%c0_54, %c0_55] : memref<8x16xf32, #tpu.memory_space<vmem>>, vector<8x16xf32>
    tpu.vector_store %arg9[%c0_54, %c0_55], %113 {strides = array<i32>} : memref<8x16xf32, #tpu.memory_space<vmem>>, vector<8x16xf32>,
    %c0_56 = arith.constant 0 : index
    %c0_57 = arith.constant 0 : index
    %115 = vector.load %arg10[%c0_56, %c0_57] : memref<1x16xf32, #tpu.memory_space<vmem>>, vector<1x16xf32>
    tpu.vector_store %arg10[%c0_56, %c0_57], %13 {strides = array<i32>} : memref<1x16xf32, #tpu.memory_space<vmem>>, vector<1x16xf32>,
    return
  }
}

</mosaic_0001>

<llo_original>
// kernel: hypermem_forward.1
$region0: #{hypermem_forward.1}
  #allocation0 [shape = 'u32[]', space=smem, size = 0x4, offset = 0x4, fixed_abs, tag = 'smem constant byte address 0x4 - core index']
  #allocation1 [shape = 'u32[72,128]{1,0:T(1,128)}', space=vmem, size = 0x9000, scoped, tag = 'internal scratch']
  #allocation2 [shape = 'f32[64,176]{1,0:T(8,128)}', space=vmem, size = 0x10000, scoped, tag = 'scratch operand']
  %s0 = inlined_call_operand.vmem [shape: f32[1,64], index: 0, kind: input, shape index: {}]
  %s1 = inlined_call_operand.hbm [shape: f32[64,256], index: 1, kind: input, shape index: {}]
  %s2 = inlined_call_operand.hbm [shape: f32[1,256], index: 2, kind: input, shape index: {}]
  %s3 = inlined_call_operand.hbm [shape: f32[8,256], index: 3, kind: input, shape index: {}]
  %s4 = inlined_call_operand.hbm [shape: f32[32,256], index: 4, kind: input, shape index: {}]
  %s5 = inlined_call_operand.vmem [shape: f32[1,256], index: 5, kind: input, shape index: {}]
  %s6 = inlined_call_operand.hbm [shape: bf16[256,1408], index: 6, kind: input, shape index: {}]
  %s7 = inlined_call_operand.hbm [shape: f32[8,1408], index: 7, kind: input, shape index: {}]
  %s8 = inlined_call_operand.hbm [shape: f32[8,64], index: 8, kind: input, shape index: {}]
  %s9 = inlined_call_operand.hbm [shape: f32[8,16], index: 9, kind: output, shape index: {0}]
  %s10 = inlined_call_operand.hbm [shape: f32[1,16], index: 10, kind: output, shape index: {1}]
  %11 = xla_tuple %s9, %s10
  %s12 = sld [smem:[#allocation0]]
  $region82: #{hypermem_forward.1} parent=0
    _
  %s14 = ssub.s32 1, %s12
  %s15 = scalar_select 0, %s14, %s12
  $region1: #{hypermem_forward.1} parent=0
    #allocation3 [shape = 'u8[65536]{0}', space=vmem, size = 0x10000, scoped, tag = 'input window, operand 1, single buffered']
    #allocation4 [shape = 's32[1]{0}', space=sflag, size = 0x4, scoped, tag = 'scoped memory for hypermem_forward.1']
    #allocation5 [shape = 's32[1]{0}', space=sflag, size = 0x4, scoped, tag = 'scoped memory for hypermem_forward.1']
    #allocation6 [shape = 'u8[1024]{0}', space=vmem, size = 0x400, scoped, tag = 'input window, operand 2, single buffered']
    #allocation7 [shape = 's32[1]{0}', space=sflag, size = 0x4, scoped, tag = 'scoped memory for hypermem_forward.1']
    #allocation8 [shape = 'u8[8192]{0}', space=vmem, size = 0x2000, scoped, tag = 'input window, operand 3, single buffered']
    #allocation9 [shape = 'u8[32768]{0}', space=vmem, size = 0x8000, scoped, tag = 'input window, operand 4, single buffered']
    #allocation10 [shape = 's32[1]{0}', space=sflag, size = 0x4, scoped, tag = 'scoped memory for hypermem_forward.1']
    #allocation11 [shape = 'u8[720896]{0}', space=vmem, size = 0xb0000, scoped, tag = 'input window, operand 6, single buffered']
    #allocation12 [shape = 'u8[45056]{0}', space=vmem, size = 0xb000, scoped, tag = 'input window, operand 7, single buffered']
    #allocation13 [shape = 's32[1]{0}', space=sflag, size = 0x4, scoped, tag = 'scoped memory for hypermem_forward.1']
    #allocation14 [shape = 'u8[4096]{0}', space=vmem, size = 0x1000, scoped, tag = 'input window, operand 8, single buffered']
    #allocation15 [shape = 'u8[4096]{0}', space=vmem, size = 0x1000, scoped, tag = 'output window, operand 0, single buffered']
    #allocation16 [shape = 'u8[512]{0}', space=vmem, size = 0x400, scoped, tag = 'output window, operand 1, single buffered']
    #allocation17 [shape = 's32[1]{0}', space=sflag, size = 0x4, scoped, tag = 'scoped memory for hypermem_forward.1']
    %16 = vsyncpa [#allocation4], 0
    %17 = vsyncpa [#allocation7], 0
    %18 = vsyncpa [#allocation10], 0
    %19 = vsyncpa [#allocation13], 0
    %20 = vsyncpa [#allocation5], 0
    %21 = vsyncpa [#allocation17], 0
    // Predicated region
    $region2: #{hypermem_forward.1} parent=1 // pred_check
      _
    $region3: #{hypermem_forward.1} parent=1 // pred_check_branch
      %23 = sbr.rel (0) target = $region5
    $region4: #{hypermem_forward.1} parent=1 // pred_region
      _
    $region5: #{hypermem_forward.1} parent=1 // pred_fallthru
      _
    // Predicated region
    $region6: #{hypermem_forward.1} parent=1 // pred_check
      _
    $region7: #{hypermem_forward.1} parent=1 // pred_check_branch
      %25 = sbr.rel (0) target = $region9
    $region8: #{hypermem_forward.1} parent=1 // pred_region
      %27 = vsyncadd [#allocation4], 0
      %s28 = sshll.u32 %s1, 4
      %s29 = int_to_ptr.hbm [resolvable:$true] %s28
      %s30 = sshll.u32 [#allocation3], 4
      %s31 = int_to_ptr.vmem [resolvable:$true] %s30
      %36 = dma.hbm_to_vmem [thread:$0]  %s29, 2048, %s31, [#allocation4], 256, 256, 16
    $region9: #{hypermem_forward.1} parent=1 // pred_fallthru
      _
    // Predicated region
    $region10: #{hypermem_forward.1} parent=1 // pred_check
      _
    $region11: #{hypermem_forward.1} parent=1 // pred_check_branch
      %38 = sbr.rel (0) target = $region13
    $region12: #{hypermem_forward.1} parent=1 // pred_region
      %40 = vsyncadd [#allocation7], 0
      %s42 = sshll.u32 %s2, 4
      %s43 = int_to_ptr.hbm [resolvable:$true] %s42
      %s44 = sshll.u32 [#allocation6], 4
      %s45 = int_to_ptr.vmem [resolvable:$true] %s44
      %47 = dma.hbm_to_vmem [thread:$0]  %s43, 32, %s45, [#allocation7]
    $region13: #{hypermem_forward.1} parent=1 // pred_fallthru
      _
    // Predicated region
    $region14: #{hypermem_forward.1} parent=1 // pred_check
      _
    $region15: #{hypermem_forward.1} parent=1 // pred_check_branch
      %49 = sbr.rel (0) target = $region17
    $region16: #{hypermem_forward.1} parent=1 // pred_region
      %51 = vsyncadd [#allocation7], 0
      %s53 = sshll.u32 %s3, 4
      %s54 = int_to_ptr.hbm [resolvable:$true] %s53
      %s55 = sshll.u32 [#allocation8], 4
      %s56 = int_to_ptr.vmem [resolvable:$true] %s55
      %58 = dma.hbm_to_vmem [thread:$0]  %s54, 256, %s56, [#allocation7]
    $region17: #{hypermem_forward.1} parent=1 // pred_fallthru
      _
    // Predicated region
    $region18: #{hypermem_forward.1} parent=1 // pred_check
      _
    $region19: #{hypermem_forward.1} parent=1 // pred_check_branch
      %60 = sbr.rel (0) target = $region21
    $region20: #{hypermem_forward.1} parent=1 // pred_region
      %62 = vsyncadd [#allocation10], 0
      %s63 = sshll.u32 %s4, 4
      %s64 = int_to_ptr.hbm [resolvable:$true] %s63
      %s65 = sshll.u32 [#allocation9], 4
      %s66 = int_to_ptr.vmem [resolvable:$true] %s65
      %71 = dma.hbm_to_vmem [thread:$0]  %s64, 1024, %s66, [#allocation10], 256, 256, 16
    $region21: #{hypermem_forward.1} parent=1 // pred_fallthru
      _
    // Predicated region
    $region22: #{hypermem_forward.1} parent=1 // pred_check
      _
    $region23: #{hypermem_forward.1} parent=1 // pred_check_branch
      %73 = sbr.rel (0) target = $region25
    $region24: #{hypermem_forward.1} parent=1 // pred_region
      _
    $region25: #{hypermem_forward.1} parent=1 // pred_fallthru
      _
    // Predicated region
    $region26: #{hypermem_forward.1} parent=1 // pred_check
      _
    $region27: #{hypermem_forward.1} parent=1 // pred_check_branch
      %75 = sbr.rel (0) target = $region29
    $region28: #{hypermem_forward.1} parent=1 // pred_region
      %77 = vsyncadd [#allocation10], 0
      %s78 = sshll.u32 %s6, 4
      %s79 = int_to_ptr.hbm [resolvable:$true] %s78
      %s80 = sshll.u32 [#allocation11], 4
      %s81 = int_to_ptr.vmem [resolvable:$true] %s80
      %86 = dma.hbm_to_vmem [thread:$0]  %s79, 22528, %s81, [#allocation10], 704, 704, 44
    $region29: #{hypermem_forward.1} parent=1 // pred_fallthru
      _
    // Predicated region
    $region30: #{hypermem_forward.1} parent=1 // pred_check
      _
    $region31: #{hypermem_forward.1} parent=1 // pred_check_branch
      %88 = sbr.rel (0) target = $region33
    $region32: #{hypermem_forward.1} parent=1 // pred_region
      %90 = vsyncadd [#allocation13], 0
      %s92 = sshll.u32 %s7, 4
      %s93 = int_to_ptr.hbm [resolvable:$true] %s92
      %s94 = sshll.u32 [#allocation12], 4
      %s95 = int_to_ptr.vmem [resolvable:$true] %s94
      %97 = dma.hbm_to_vmem [thread:$0]  %s93, 1408, %s95, [#allocation13]
    $region33: #{hypermem_forward.1} parent=1 // pred_fallthru
      _
    // Predicated region
    $region34: #{hypermem_forward.1} parent=1 // pred_check
      _
    $region35: #{hypermem_forward.1} parent=1 // pred_check_branch
      %99 = sbr.rel (0) target = $region37
    $region36: #{hypermem_forward.1} parent=1 // pred_region
      %101 = vsyncadd [#allocation13], 0
      %s103 = sshll.u32 %s8, 4
      %s104 = int_to_ptr.hbm [resolvable:$true] %s103
      %s105 = sshll.u32 [#allocation14], 4
      %s106 = int_to_ptr.vmem [resolvable:$true] %s105
      %108 = dma.hbm_to_vmem [thread:$0]  %s104, 128, %s106, [#allocation13]
    $region37: #{hypermem_forward.1} parent=1 // pred_fallthru
      _
    // Predicated region
    $region38: #{hypermem_forward.1} parent=1 // pred_check
      _
    $region39: #{hypermem_forward.1} parent=1 // pred_check_branch
      %110 = sbr.rel (0) target = $region41
    $region40: #{hypermem_forward.1} parent=1 // pred_region
      %112 = dma.done [#allocation4], 2048
    $region41: #{hypermem_forward.1} parent=1 // pred_fallthru
      _
    // Predicated region
    $region42: #{hypermem_forward.1} parent=1 // pred_check
      _
    $region43: #{hypermem_forward.1} parent=1 // pred_check_branch
      %114 = sbr.rel (0) target = $region45
    $region44: #{hypermem_forward.1} parent=1 // pred_region
      %116 = dma.done [#allocation7], 32
    $region45: #{hypermem_forward.1} parent=1 // pred_fallthru
      _
    // Predicated region
    $region46: #{hypermem_forward.1} parent=1 // pred_check
      _
    $region47: #{hypermem_forward.1} parent=1 // pred_check_branch
      %118 = sbr.rel (0) target = $region49
    $region48: #{hypermem_forward.1} parent=1 // pred_region
      %120 = dma.done [#allocation7], 256
    $region49: #{hypermem_forward.1} parent=1 // pred_fallthru
      _
    // Predicated region
    $region50: #{hypermem_forward.1} parent=1 // pred_check
      _
    $region51: #{hypermem_forward.1} parent=1 // pred_check_branch
      %122 = sbr.rel (0) target = $region53
    $region52: #{hypermem_forward.1} parent=1 // pred_region
      %124 = dma.done [#allocation10], 1024
    $region53: #{hypermem_forward.1} parent=1 // pred_fallthru
      _
    // Predicated region
    $region54: #{hypermem_forward.1} parent=1 // pred_check
      _
    $region55: #{hypermem_forward.1} parent=1 // pred_check_branch
      %126 = sbr.rel (0) target = $region57
    $region56: #{hypermem_forward.1} parent=1 // pred_region
      %128 = dma.done [#allocation10], 22528
    $region57: #{hypermem_forward.1} parent=1 // pred_fallthru
      _
    // Predicated region
    $region58: #{hypermem_forward.1} parent=1 // pred_check
      _
    $region59: #{hypermem_forward.1} parent=1 // pred_check_branch
      %130 = sbr.rel (0) target = $region61
    $region60: #{hypermem_forward.1} parent=1 // pred_region
      %132 = dma.done [#allocation13], 1408
    $region61: #{hypermem_forward.1} parent=1 // pred_fallthru
      _
    // Predicated region
    $region62: #{hypermem_forward.1} parent=1 // pred_check
      _
    $region63: #{hypermem_forward.1} parent=1 // pred_check_branch
      %134 = sbr.rel (0) target = $region65
    $region64: #{hypermem_forward.1} parent=1 // pred_region
      %136 = dma.done [#allocation13], 128
    $region65: #{hypermem_forward.1} parent=1 // pred_fallthru
      _
    %v137 = vld [vmem:[%s0] sm:$0x1]
    %v138 = vld [vmem:[#allocation3] sm:$0xff]
    %v139 = vld [vmem:[#allocation3 + $0x8] sm:$0xff]
    %v140 = vld [vmem:[#allocation3 + $0x10] sm:$0xff]
    %v141 = vld [vmem:[#allocation3 + $0x18] sm:$0xff]
    %v142 = vld [vmem:[#allocation3 + $0x20] sm:$0xff]
    %v143 = vld [vmem:[#allocation3 + $0x28] sm:$0xff]
    %v144 = vld [vmem:[#allocation3 + $0x30] sm:$0xff]
    %v145 = vld [vmem:[#allocation3 + $0x38] sm:$0xff]
    %v146 = vld [vmem:[#allocation3 + $0x40] sm:$0xff]
    %v147 = vld [vmem:[#allocation3 + $0x48] sm:$0xff]
    %v148 = vld [vmem:[#allocation3 + $0x50] sm:$0xff]
    %v149 = vld [vmem:[#allocation3 + $0x58] sm:$0xff]
    %v150 = vld [vmem:[#allocation3 + $0x60] sm:$0xff]
    %v151 = vld [vmem:[#allocation3 + $0x68] sm:$0xff]
    %v152 = vld [vmem:[#allocation3 + $0x70] sm:$0xff]
    %v153 = vld [vmem:[#allocation3 + $0x78] sm:$0xff]
    %v154 = vld [vmem:[#allocation6] sm:$0x3]
    %v156 = vperm.slane %v154, 0
    %v157 = vperm.slane %v154, 1
    %vm160 = vcmask 523264
    %v162 = vsel %vm160, %v137, 0
    %164 = vmatpush.msra.mxu0 0.0
    %165 = vmatpush.msra.mxu0 0.0
    %166 = vmatpush.msra.mxu0 0.0
    %167 = vmatpush.msra.mxu0 0.0
    %168 = vmatpush.msra.mxu0 0.0
    %169 = vmatpush.msra.mxu0 0.0
    %170 = vmatpush.msra.mxu0 0.0
    %171 = vmatpush.msra.mxu0 0.0
    %172 = vmatpush.msra.mxu0 %v152
    %173 = vmatpush.msra.mxu0 %v150
    %174 = vmatpush.msra.mxu0 %v148
    %175 = vmatpush.msra.mxu0 %v146
    %176 = vmatpush.msra.mxu0 %v144
    %177 = vmatpush.msra.mxu0 %v142
    %178 = vmatpush.msra.mxu0 %v140
    %179 = vmatpush.msra.mxu0 %v138
    %180 = vmatmul.f32.gmra.mxu0 %v162
    %v181 = vpop.f32.mrf.mxu0
    %v182 = vadd.f32 %v156, %v181
    %183 = vdwg.mxu0
    %184 = vmatpush.msra.mxu0 0.0
    %185 = vmatpush.msra.mxu0 0.0
    %186 = vmatpush.msra.mxu0 0.0
    %187 = vmatpush.msra.mxu0 0.0
    %188 = vmatpush.msra.mxu0 0.0
    %189 = vmatpush.msra.mxu0 0.0
    %190 = vmatpush.msra.mxu0 0.0
    %191 = vmatpush.msra.mxu0 0.0
    %192 = vmatpush.msra.mxu0 %v153
    %193 = vmatpush.msra.mxu0 %v151
    %194 = vmatpush.msra.mxu0 %v149
    %195 = vmatpush.msra.mxu0 %v147
    %196 = vmatpush.msra.mxu0 %v145
    %197 = vmatpush.msra.mxu0 %v143
    %198 = vmatpush.msra.mxu0 %v141
    %199 = vmatpush.msra.mxu0 %v139
    %200 = vmatmul.f32.gmra.mxu0 %v162
    %v201 = vpop.f32.mrf.mxu0
    %v202 = vadd.f32 %v157, %v201
    %203 = vdwg.mxu0
    %v204 = vmax.f32 %v182, 0.0
    %v205 = vmax.f32 %v202, 0.0
    %v206 = vld [vmem:[#allocation9] sm:$0xff]
    %v207 = vld [vmem:[#allocation9 + $0x8] sm:$0xff]
    %v208 = vld [vmem:[#allocation9 + $0x10] sm:$0xff]
    %v209 = vld [vmem:[#allocation9 + $0x18] sm:$0xff]
    %v210 = vld [vmem:[#allocation9 + $0x20] sm:$0xff]
    %v211 = vld [vmem:[#allocation9 + $0x28] sm:$0xff]
    %v212 = vld [vmem:[#allocation9 + $0x30] sm:$0xff]
    %v213 = vld [vmem:[#allocation9 + $0x38] sm:$0xff]
    %v214 = vld [vmem:[%s5] sm:$0x3]
    %v216 = vperm.slane %v214, 0
    %v217 = vperm.slane %v214, 1
    %vm220 = vcmask 261120
    %v222 = vsel %vm220, %v204, 0
    %224 = vmatpush.msra.mxu0 0.0
    %225 = vmatpush.msra.mxu0 0.0
    %226 = vmatpush.msra.mxu0 0.0
    %227 = vmatpush.msra.mxu0 0.0
    %228 = vmatpush.msra.mxu0 0.0
    %229 = vmatpush.msra.mxu0 0.0
    %230 = vmatpush.msra.mxu0 0.0
    %231 = vmatpush.msra.mxu0 0.0
    %232 = vmatpush.msra.mxu0 0.0
    %233 = vmatpush.msra.mxu0 0.0
    %234 = vmatpush.msra.mxu0 0.0
    %235 = vmatpush.msra.mxu0 0.0
    %236 = vmatpush.msra.mxu0 %v212
    %237 = vmatpush.msra.mxu0 %v210
    %238 = vmatpush.msra.mxu0 %v208
    %239 = vmatpush.msra.mxu0 %v206
    %240 = vmatmul.f32.gmra.mxu0 %v222
    %v241 = vpop.f32.mrf.mxu0
    %v242 = vadd.f32 %v216, %v241
    %243 = vdwg.mxu0
    %244 = vmatpush.msra.mxu0 0.0
    %245 = vmatpush.msra.mxu0 0.0
    %246 = vmatpush.msra.mxu0 0.0
    %247 = vmatpush.msra.mxu0 0.0
    %248 = vmatpush.msra.mxu0 0.0
    %249 = vmatpush.msra.mxu0 0.0
    %250 = vmatpush.msra.mxu0 0.0
    %251 = vmatpush.msra.mxu0 0.0
    %252 = vmatpush.msra.mxu0 0.0
    %253 = vmatpush.msra.mxu0 0.0
    %254 = vmatpush.msra.mxu0 0.0
    %255 = vmatpush.msra.mxu0 0.0
    %256 = vmatpush.msra.mxu0 %v213
    %257 = vmatpush.msra.mxu0 %v211
    %258 = vmatpush.msra.mxu0 %v209
    %259 = vmatpush.msra.mxu0 %v207
    %260 = vmatmul.f32.gmra.mxu0 %v222
    %v261 = vpop.f32.mrf.mxu0
    %v262 = vadd.f32 %v217, %v261
    %263 = vdwg.mxu0
    %v264 = vld [vmem:[#allocation8] sm:$0xff]
    %v265 = vld [vmem:[#allocation8 + $0x8] sm:$0xff]
    %v266 = vperm.slane %v204, 0
    %v267 = vperm.slane %v205, 0
    %v268 = vmul.f32 %v264, %v266
    %v269 = vmul.f32 %v265, %v267
    %v270 = vpack.c.bf16 %v268, %v268
    %v271 = vpack.c.bf16 %v269, %v269
    %v272 = vld [vmem:[#allocation11] sm:$0xff]
    %v273 = vld [vmem:[#allocation11 + $0x8] sm:$0xff]
    %v274 = vld [vmem:[#allocation11 + $0x10] sm:$0xff]
    %v275 = vld [vmem:[#allocation11 + $0x18] sm:$0xff]
    %v276 = vld [vmem:[#allocation11 + $0x20] sm:$0xff]
    %v277 = vld [vmem:[#allocation11 + $0x28] sm:$0xf]
    %v278 = vld [vmem:[#allocation11 + $0x2c] sm:$0xff]
    %v279 = vld [vmem:[#allocation11 + $0x34] sm:$0xff]
    %v280 = vld [vmem:[#allocation11 + $0x3c] sm:$0xff]
    %v281 = vld [vmem:[#allocation11 + $0x44] sm:$0xff]
    %v282 = vld [vmem:[#allocation11 + $0x4c] sm:$0xff]
    %v283 = vld [vmem:[#allocation11 + $0x54] sm:$0xf]
    %v284 = vld [vmem:[#allocation11 + $0x58] sm:$0xff]
    %v285 = vld [vmem:[#allocation11 + $0x60] sm:$0xff]
    %v286 = vld [vmem:[#allocation11 + $0x68] sm:$0xff]
    %v287 = vld [vmem:[#allocation11 + $0x70] sm:$0xff]
    %v288 = vld [vmem:[#allocation11 + $0x78] sm:$0xff]
    %v289 = vld [vmem:[#allocation11 + $0x80] sm:$0xf]
    %v290 = vld [vmem:[#allocation11 + $0x84] sm:$0xff]
    %v291 = vld [vmem:[#allocation11 + $0x8c] sm:$0xff]
    %v292 = vld [vmem:[#allocation11 + $0x94] sm:$0xff]
    %v293 = vld [vmem:[#allocation11 + $0x9c] sm:$0xff]
    %v294 = vld [vmem:[#allocation11 + $0xa4] sm:$0xff]
    %v295 = vld [vmem:[#allocation11 + $0xac] sm:$0xf]
    %v296 = vld [vmem:[#allocation11 + $0xb0] sm:$0xff]
    %v297 = vld [vmem:[#allocation11 + $0xb8] sm:$0xff]
    %v298 = vld [vmem:[#allocation11 + $0xc0] sm:$0xff]
    %v299 = vld [vmem:[#allocation11 + $0xc8] sm:$0xff]
    %v300 = vld [vmem:[#allocation11 + $0xd0] sm:$0xff]
    %v301 = vld [vmem:[#allocation11 + $0xd8] sm:$0xf]
    %v302 = vld [vmem:[#allocation11 + $0xdc] sm:$0xff]
    %v303 = vld [vmem:[#allocation11 + $0xe4] sm:$0xff]
    %v304 = vld [vmem:[#allocation11 + $0xec] sm:$0xff]
    %v305 = vld [vmem:[#allocation11 + $0xf4] sm:$0xff]
    %v306 = vld [vmem:[#allocation11 + $0xfc] sm:$0xff]
    %v307 = vld [vmem:[#allocation11 + $0x104] sm:$0xf]
    %v308 = vld [vmem:[#allocation11 + $0x108] sm:$0xff]
    %v309 = vld [vmem:[#allocation11 + $0x110] sm:$0xff]
    %v310 = vld [vmem:[#allocation11 + $0x118] sm:$0xff]
    %v311 = vld [vmem:[#allocation11 + $0x120] sm:$0xff]
    %v312 = vld [vmem:[#allocation11 + $0x128] sm:$0xff]
    %v313 = vld [vmem:[#allocation11 + $0x130] sm:$0xf]
    %v314 = vld [vmem:[#allocation11 + $0x134] sm:$0xff]
    %v315 = vld [vmem:[#allocation11 + $0x13c] sm:$0xff]
    %v316 = vld [vmem:[#allocation11 + $0x144] sm:$0xff]
    %v317 = vld [vmem:[#allocation11 + $0x14c] sm:$0xff]
    %v318 = vld [vmem:[#allocation11 + $0x154] sm:$0xff]
    %v319 = vld [vmem:[#allocation11 + $0x15c] sm:$0xf]
    %v320 = vld [vmem:[#allocation11 + $0x160] sm:$0xff]
    %v321 = vld [vmem:[#allocation11 + $0x168] sm:$0xff]
    %v322 = vld [vmem:[#allocation11 + $0x170] sm:$0xff]
    %v323 = vld [vmem:[#allocation11 + $0x178] sm:$0xff]
    %v324 = vld [vmem:[#allocation11 + $0x180] sm:$0xff]
    %v325 = vld [vmem:[#allocation11 + $0x188] sm:$0xf]
    %v326 = vld [vmem:[#allocation11 + $0x18c] sm:$0xff]
    %v327 = vld [vmem:[#allocation11 + $0x194] sm:$0xff]
    %v328 = vld [vmem:[#allocation11 + $0x19c] sm:$0xff]
    %v329 = vld [vmem:[#allocation11 + $0x1a4] sm:$0xff]
    %v330 = vld [vmem:[#allocation11 + $0x1ac] sm:$0xff]
    %v331 = vld [vmem:[#allocation11 + $0x1b4] sm:$0xf]
    %v332 = vld [vmem:[#allocation11 + $0x1b8] sm:$0xff]
    %v333 = vld [vmem:[#allocation11 + $0x1c0] sm:$0xff]
    %v334 = vld [vmem:[#allocation11 + $0x1c8] sm:$0xff]
    %v335 = vld [vmem:[#allocation11 + $0x1d0] sm:$0xff]
    %v336 = vld [vmem:[#allocation11 + $0x1d8] sm:$0xff]
    %v337 = vld [vmem:[#allocation11 + $0x1e0] sm:$0xf]
    %v338 = vld [vmem:[#allocation11 + $0x1e4] sm:$0xff]
    %v339 = vld [vmem:[#allocation11 + $0x1ec] sm:$0xff]
    %v340 = vld [vmem:[#allocation11 + $0x1f4] sm:$0xff]
    %v341 = vld [vmem:[#allocation11 + $0x1fc] sm:$0xff]
    %v342 = vld [vmem:[#allocation11 + $0x204] sm:$0xff]
    %v343 = vld [vmem:[#allocation11 + $0x20c] sm:$0xf]
    %v344 = vld [vmem:[#allocation11 + $0x210] sm:$0xff]
    %v345 = vld [vmem:[#allocation11 + $0x218] sm:$0xff]
    %v346 = vld [vmem:[#allocation11 + $0x220] sm:$0xff]
    %v347 = vld [vmem:[#allocation11 + $0x228] sm:$0xff]
    %v348 = vld [vmem:[#allocation11 + $0x230] sm:$0xff]
    %v349 = vld [vmem:[#allocation11 + $0x238] sm:$0xf]
    %v350 = vld [vmem:[#allocation11 + $0x23c] sm:$0xff]
    %v351 = vld [vmem:[#allocation11 + $0x244] sm:$0xff]
    %v352 = vld [vmem:[#allocation11 + $0x24c] sm:$0xff]
    %v353 = vld [vmem:[#allocation11 + $0x254] sm:$0xff]
    %v354 = vld [vmem:[#allocation11 + $0x25c] sm:$0xff]
    %v355 = vld [vmem:[#allocation11 + $0x264] sm:$0xf]
    %v356 = vld [vmem:[#allocation11 + $0x268] sm:$0xff]
    %v357 = vld [vmem:[#allocation11 + $0x270] sm:$0xff]
    %v358 = vld [vmem:[#allocation11 + $0x278] sm:$0xff]
    %v359 = vld [vmem:[#allocation11 + $0x280] sm:$0xff]
    %v360 = vld [vmem:[#allocation11 + $0x288] sm:$0xff]
    %v361 = vld [vmem:[#allocation11 + $0x290] sm:$0xf]
    %v362 = vld [vmem:[#allocation11 + $0x294] sm:$0xff]
    %v363 = vld [vmem:[#allocation11 + $0x29c] sm:$0xff]
    %v364 = vld [vmem:[#allocation11 + $0x2a4] sm:$0xff]
    %v365 = vld [vmem:[#allocation11 + $0x2ac] sm:$0xff]
    %v366 = vld [vmem:[#allocation11 + $0x2b4] sm:$0xff]
    %v367 = vld [vmem:[#allocation11 + $0x2bc] sm:$0xf]
    %v368 = vld [vmem:[#allocation11 + $0x2c0] sm:$0xff]
    %v369 = vld [vmem:[#allocation11 + $0x2c8] sm:$0xff]
    %v370 = vld [vmem:[#allocation11 + $0x2d0] sm:$0xff]
    %v371 = vld [vmem:[#allocation11 + $0x2d8] sm:$0xff]
    %v372 = vld [vmem:[#allocation11 + $0x2e0] sm:$0xff]
    %v373 = vld [vmem:[#allocation11 + $0x2e8] sm:$0xf]
    %v374 = vld [vmem:[#allocation11 + $0x2ec] sm:$0xff]
    %v375 = vld [vmem:[#allocation11 + $0x2f4] sm:$0xff]
    %v376 = vld [vmem:[#allocation11 + $0x2fc] sm:$0xff]
    %v377 = vld [vmem:[#allocation11 + $0x304] sm:$0xff]
    %v378 = vld [vmem:[#allocation11 + $0x30c] sm:$0xff]
    %v379 = vld [vmem:[#allocation11 + $0x314] sm:$0xf]
    %v380 = vld [vmem:[#allocation11 + $0x318] sm:$0xff]
    %v381 = vld [vmem:[#allocation11 + $0x320] sm:$0xff]
    %v382 = vld [vmem:[#allocation11 + $0x328] sm:$0xff]
    %v383 = vld [vmem:[#allocation11 + $0x330] sm:$0xff]
    %v384 = vld [vmem:[#allocation11 + $0x338] sm:$0xff]
    %v385 = vld [vmem:[#allocation11 + $0x340] sm:$0xf]
    %v386 = vld [vmem:[#allocation11 + $0x344] sm:$0xff]
    %v387 = vld [vmem:[#allocation11 + $0x34c] sm:$0xff]
    %v388 = vld [vmem:[#allocation11 + $0x354] sm:$0xff]
    %v389 = vld [vmem:[#allocation11 + $0x35c] sm:$0xff]
    %v390 = vld [vmem:[#allocation11 + $0x364] sm:$0xff]
    %v391 = vld [vmem:[#allocation11 + $0x36c] sm:$0xf]
    %v392 = vld [vmem:[#allocation11 + $0x370] sm:$0xff]
    %v393 = vld [vmem:[#allocation11 + $0x378] sm:$0xff]
    %v394 = vld [vmem:[#allocation11 + $0x380] sm:$0xff]
    %v395 = vld [vmem:[#allocation11 + $0x388] sm:$0xff]
    %v396 = vld [vmem:[#allocation11 + $0x390] sm:$0xff]
    %v397 = vld [vmem:[#allocation11 + $0x398] sm:$0xf]
    %v398 = vld [vmem:[#allocation11 + $0x39c] sm:$0xff]
    %v399 = vld [vmem:[#allocation11 + $0x3a4] sm:$0xff]
    %v400 = vld [vmem:[#allocation11 + $0x3ac] sm:$0xff]
    %v401 = vld [vmem:[#allocation11 + $0x3b4] sm:$0xff]
    %v402 = vld [vmem:[#allocation11 + $0x3bc] sm:$0xff]
    %v403 = vld [vmem:[#allocation11 + $0x3c4] sm:$0xf]
    %v404 = vld [vmem:[#allocation11 + $0x3c8] sm:$0xff]
    %v405 = vld [vmem:[#allocation11 + $0x3d0] sm:$0xff]
    %v406 = vld [vmem:[#allocation11 + $0x3d8] sm:$0xff]
    %v407 = vld [vmem:[#allocation11 + $0x3e0] sm:$0xff]
    %v408 = vld [vmem:[#allocation11 + $0x3e8] sm:$0xff]
    %v409 = vld [vmem:[#allocation11 + $0x3f0] sm:$0xf]
    %v410 = vld [vmem:[#allocation11 + $0x3f4] sm:$0xff]
    %v411 = vld [vmem:[#allocation11 + $0x3fc] sm:$0xff]
    %v412 = vld [vmem:[#allocation11 + $0x404] sm:$0xff]
    %v413 = vld [vmem:[#allocation11 + $0x40c] sm:$0xff]
    %v414 = vld [vmem:[#allocation11 + $0x414] sm:$0xff]
    %v415 = vld [vmem:[#allocation11 + $0x41c] sm:$0xf]
    %v416 = vld [vmem:[#allocation11 + $0x420] sm:$0xff]
    %v417 = vld [vmem:[#allocation11 + $0x428] sm:$0xff]
    %v418 = vld [vmem:[#allocation11 + $0x430] sm:$0xff]
    %v419 = vld [vmem:[#allocation11 + $0x438] sm:$0xff]
    %v420 = vld [vmem:[#allocation11 + $0x440] sm:$0xff]
    %v421 = vld [vmem:[#allocation11 + $0x448] sm:$0xf]
    %v422 = vld [vmem:[#allocation11 + $0x44c] sm:$0xff]
    %v423 = vld [vmem:[#allocation11 + $0x454] sm:$0xff]
    %v424 = vld [vmem:[#allocation11 + $0x45c] sm:$0xff]
    %v425 = vld [vmem:[#allocation11 + $0x464] sm:$0xff]
    %v426 = vld [vmem:[#allocation11 + $0x46c] sm:$0xff]
    %v427 = vld [vmem:[#allocation11 + $0x474] sm:$0xf]
    %v428 = vld [vmem:[#allocation11 + $0x478] sm:$0xff]
    %v429 = vld [vmem:[#allocation11 + $0x480] sm:$0xff]
    %v430 = vld [vmem:[#allocation11 + $0x488] sm:$0xff]
    %v431 = vld [vmem:[#allocation11 + $0x490] sm:$0xff]
    %v432 = vld [vmem:[#allocation11 + $0x498] sm:$0xff]
    %v433 = vld [vmem:[#allocation11 + $0x4a0] sm:$0xf]
    %v434 = vld [vmem:[#allocation11 + $0x4a4] sm:$0xff]
    %v435 = vld [vmem:[#allocation11 + $0x4ac] sm:$0xff]
    %v436 = vld [vmem:[#allocation11 + $0x4b4] sm:$0xff]
    %v437 = vld [vmem:[#allocation11 + $0x4bc] sm:$0xff]
    %v438 = vld [vmem:[#allocation11 + $0x4c4] sm:$0xff]
    %v439 = vld [vmem:[#allocation11 + $0x4cc] sm:$0xf]
    %v440 = vld [vmem:[#allocation11 + $0x4d0] sm:$0xff]
    %v441 = vld [vmem:[#allocation11 + $0x4d8] sm:$0xff]
    %v442 = vld [vmem:[#allocation11 + $0x4e0] sm:$0xff]
    %v443 = vld [vmem:[#allocation11 + $0x4e8] sm:$0xff]
    %v444 = vld [vmem:[#allocation11 + $0x4f0] sm:$0xff]
    %v445 = vld [vmem:[#allocation11 + $0x4f8] sm:$0xf]
    %v446 = vld [vmem:[#allocation11 + $0x4fc] sm:$0xff]
    %v447 = vld [vmem:[#allocation11 + $0x504] sm:$0xff]
    %v448 = vld [vmem:[#allocation11 + $0x50c] sm:$0xff]
    %v449 = vld [vmem:[#allocation11 + $0x514] sm:$0xff]
    %v450 = vld [vmem:[#allocation11 + $0x51c] sm:$0xff]
    %v451 = vld [vmem:[#allocation11 + $0x524] sm:$0xf]
    %v452 = vld [vmem:[#allocation11 + $0x528] sm:$0xff]
    %v453 = vld [vmem:[#allocation11 + $0x530] sm:$0xff]
    %v454 = vld [vmem:[#allocation11 + $0x538] sm:$0xff]
    %v455 = vld [vmem:[#allocation11 + $0x540] sm:$0xff]
    %v456 = vld [vmem:[#allocation11 + $0x548] sm:$0xff]
    %v457 = vld [vmem:[#allocation11 + $0x550] sm:$0xf]
    %v458 = vld [vmem:[#allocation11 + $0x554] sm:$0xff]
    %v459 = vld [vmem:[#allocation11 + $0x55c] sm:$0xff]
    %v460 = vld [vmem:[#allocation11 + $0x564] sm:$0xff]
    %v461 = vld [vmem:[#allocation11 + $0x56c] sm:$0xff]
    %v462 = vld [vmem:[#allocation11 + $0x574] sm:$0xff]
    %v463 = vld [vmem:[#allocation11 + $0x57c] sm:$0xf]
    %v464 = vld [vmem:[#allocation12] sm:$0xff]
    %v465 = vld [vmem:[#allocation12 + $0x8] sm:$0xff]
    %v466 = vld [vmem:[#allocation12 + $0x10] sm:$0xff]
    %v467 = vld [vmem:[#allocation12 + $0x18] sm:$0xff]
    %v468 = vld [vmem:[#allocation12 + $0x20] sm:$0xff]
    %v469 = vld [vmem:[#allocation12 + $0x28] sm:$0xff]
    %v470 = vld [vmem:[#allocation12 + $0x30] sm:$0xff]
    %v471 = vld [vmem:[#allocation12 + $0x38] sm:$0xff]
    %v472 = vld [vmem:[#allocation12 + $0x40] sm:$0xff]
    %v473 = vld [vmem:[#allocation12 + $0x48] sm:$0xff]
    %v474 = vld [vmem:[#allocation12 + $0x50] sm:$0xff]
    %v667 = vunpack.c.l.b16 %v272
    %v668 = vunpack.c.h.b16 %v272
    %v669 = vunpack.c.l.b16 %v273
    %v670 = vunpack.c.h.b16 %v273
    %v671 = vunpack.c.l.b16 %v274
    %v672 = vunpack.c.h.b16 %v274
    %v673 = vunpack.c.l.b16 %v275
    %v674 = vunpack.c.h.b16 %v275
    %v675 = vunpack.c.l.b16 %v276
    %v676 = vunpack.c.h.b16 %v276
    %v677 = vunpack.c.l.b16 %v277
    %v678 = vunpack.c.l.b16 %v278
    %v679 = vunpack.c.h.b16 %v278
    %v680 = vunpack.c.l.b16 %v279
    %v681 = vunpack.c.h.b16 %v279
    %v682 = vunpack.c.l.b16 %v280
    %v683 = vunpack.c.h.b16 %v280
    %v684 = vunpack.c.l.b16 %v281
    %v685 = vunpack.c.h.b16 %v281
    %v686 = vunpack.c.l.b16 %v282
    %v687 = vunpack.c.h.b16 %v282
    %v688 = vunpack.c.l.b16 %v283
    %v689 = vunpack.c.l.b16 %v284
    %v690 = vunpack.c.h.b16 %v284
    %v691 = vunpack.c.l.b16 %v285
    %v692 = vunpack.c.h.b16 %v285
    %v693 = vunpack.c.l.b16 %v286
    %v694 = vunpack.c.h.b16 %v286
    %v695 = vunpack.c.l.b16 %v287
    %v696 = vunpack.c.h.b16 %v287
    %v697 = vunpack.c.l.b16 %v288
    %v698 = vunpack.c.h.b16 %v288
    %v699 = vunpack.c.l.b16 %v289
    %v700 = vunpack.c.l.b16 %v290
    %v701 = vunpack.c.h.b16 %v290
    %v702 = vunpack.c.l.b16 %v291
    %v703 = vunpack.c.h.b16 %v291
    %v704 = vunpack.c.l.b16 %v292
    %v705 = vunpack.c.h.b16 %v292
    %v706 = vunpack.c.l.b16 %v293
    %v707 = vunpack.c.h.b16 %v293
    %v708 = vunpack.c.l.b16 %v294
    %v709 = vunpack.c.h.b16 %v294
    %v710 = vunpack.c.l.b16 %v295
    %v711 = vunpack.c.l.b16 %v296
    %v712 = vunpack.c.h.b16 %v296
    %v713 = vunpack.c.l.b16 %v297
    %v714 = vunpack.c.h.b16 %v297
    %v715 = vunpack.c.l.b16 %v298
    %v716 = vunpack.c.h.b16 %v298
    %v717 = vunpack.c.l.b16 %v299
    %v718 = vunpack.c.h.b16 %v299
    %v719 = vunpack.c.l.b16 %v300
    %v720 = vunpack.c.h.b16 %v300
    %v721 = vunpack.c.l.b16 %v301
    %v722 = vunpack.c.l.b16 %v302
    %v723 = vunpack.c.h.b16 %v302
    %v724 = vunpack.c.l.b16 %v303
    %v725 = vunpack.c.h.b16 %v303
    %v726 = vunpack.c.l.b16 %v304
    %v727 = vunpack.c.h.b16 %v304
    %v728 = vunpack.c.l.b16 %v305
    %v729 = vunpack.c.h.b16 %v305
    %v730 = vunpack.c.l.b16 %v306
    %v731 = vunpack.c.h.b16 %v306
    %v732 = vunpack.c.l.b16 %v307
    %v733 = vunpack.c.l.b16 %v308
    %v734 = vunpack.c.h.b16 %v308
    %v735 = vunpack.c.l.b16 %v309
    %v736 = vunpack.c.h.b16 %v309
    %v737 = vunpack.c.l.b16 %v310
    %v738 = vunpack.c.h.b16 %v310
    %v739 = vunpack.c.l.b16 %v311
    %v740 = vunpack.c.h.b16 %v311
    %v741 = vunpack.c.l.b16 %v312
    %v742 = vunpack.c.h.b16 %v312
    %v743 = vunpack.c.l.b16 %v313
    %v744 = vunpack.c.l.b16 %v314
    %v745 = vunpack.c.h.b16 %v314
    %v746 = vunpack.c.l.b16 %v315
    %v747 = vunpack.c.h.b16 %v315
    %v748 = vunpack.c.l.b16 %v316
    %v749 = vunpack.c.h.b16 %v316
    %v750 = vunpack.c.l.b16 %v317
    %v751 = vunpack.c.h.b16 %v317
    %v752 = vunpack.c.l.b16 %v318
    %v753 = vunpack.c.h.b16 %v318
    %v754 = vunpack.c.l.b16 %v319
    %v755 = vunpack.c.l.b16 %v320
    %v756 = vunpack.c.h.b16 %v320
    %v757 = vunpack.c.l.b16 %v321
    %v758 = vunpack.c.h.b16 %v321
    %v759 = vunpack.c.l.b16 %v322
    %v760 = vunpack.c.h.b16 %v322
    %v761 = vunpack.c.l.b16 %v323
    %v762 = vunpack.c.h.b16 %v323
    %v763 = vunpack.c.l.b16 %v324
    %v764 = vunpack.c.h.b16 %v324
    %v765 = vunpack.c.l.b16 %v325
    %v766 = vunpack.c.l.b16 %v326
    %v767 = vunpack.c.h.b16 %v326
    %v768 = vunpack.c.l.b16 %v327
    %v769 = vunpack.c.h.b16 %v327
    %v770 = vunpack.c.l.b16 %v328
    %v771 = vunpack.c.h.b16 %v328
    %v772 = vunpack.c.l.b16 %v329
    %v773 = vunpack.c.h.b16 %v329
    %v774 = vunpack.c.l.b16 %v330
    %v775 = vunpack.c.h.b16 %v330
    %v776 = vunpack.c.l.b16 %v331
    %v777 = vunpack.c.l.b16 %v332
    %v778 = vunpack.c.h.b16 %v332
    %v779 = vunpack.c.l.b16 %v333
    %v780 = vunpack.c.h.b16 %v333
    %v781 = vunpack.c.l.b16 %v334
    %v782 = vunpack.c.h.b16 %v334
    %v783 = vunpack.c.l.b16 %v335
    %v784 = vunpack.c.h.b16 %v335
    %v785 = vunpack.c.l.b16 %v336
    %v786 = vunpack.c.h.b16 %v336
    %v787 = vunpack.c.l.b16 %v337
    %v788 = vunpack.c.l.b16 %v338
    %v789 = vunpack.c.h.b16 %v338
    %v790 = vunpack.c.l.b16 %v339
    %v791 = vunpack.c.h.b16 %v339
    %v792 = vunpack.c.l.b16 %v340
    %v793 = vunpack.c.h.b16 %v340
    %v794 = vunpack.c.l.b16 %v341
    %v795 = vunpack.c.h.b16 %v341
    %v796 = vunpack.c.l.b16 %v342
    %v797 = vunpack.c.h.b16 %v342
    %v798 = vunpack.c.l.b16 %v343
    %v799 = vunpack.c.l.b16 %v344
    %v800 = vunpack.c.h.b16 %v344
    %v801 = vunpack.c.l.b16 %v345
    %v802 = vunpack.c.h.b16 %v345
    %v803 = vunpack.c.l.b16 %v346
    %v804 = vunpack.c.h.b16 %v346
    %v805 = vunpack.c.l.b16 %v347
    %v806 = vunpack.c.h.b16 %v347
    %v807 = vunpack.c.l.b16 %v348
    %v808 = vunpack.c.h.b16 %v348
    %v809 = vunpack.c.l.b16 %v349
    %v810 = vunpack.c.l.b16 %v350
    %v811 = vunpack.c.h.b16 %v350
    %v812 = vunpack.c.l.b16 %v351
    %v813 = vunpack.c.h.b16 %v351
    %v814 = vunpack.c.l.b16 %v352
    %v815 = vunpack.c.h.b16 %v352
    %v816 = vunpack.c.l.b16 %v353
    %v817 = vunpack.c.h.b16 %v353
    %v818 = vunpack.c.l.b16 %v354
    %v819 = vunpack.c.h.b16 %v354
    %v820 = vunpack.c.l.b16 %v355
    %v821 = vunpack.c.l.b16 %v356
    %v822 = vunpack.c.h.b16 %v356
    %v823 = vunpack.c.l.b16 %v357
    %v824 = vunpack.c.h.b16 %v357
    %v825 = vunpack.c.l.b16 %v358
    %v826 = vunpack.c.h.b16 %v358
    %v827 = vunpack.c.l.b16 %v359
    %v828 = vunpack.c.h.b16 %v359
    %v829 = vunpack.c.l.b16 %v360
    %v830 = vunpack.c.h.b16 %v360
    %v831 = vunpack.c.l.b16 %v361
    %v832 = vunpack.c.l.b16 %v362
    %v833 = vunpack.c.h.b16 %v362
    %v834 = vunpack.c.l.b16 %v363
    %v835 = vunpack.c.h.b16 %v363
    %v836 = vunpack.c.l.b16 %v364
    %v837 = vunpack.c.h.b16 %v364
    %v838 = vunpack.c.l.b16 %v365
    %v839 = vunpack.c.h.b16 %v365
    %v840 = vunpack.c.l.b16 %v366
    %v841 = vunpack.c.h.b16 %v366
    %v842 = vunpack.c.l.b16 %v367
    %v843 = vunpack.c.l.b16 %v368
    %v844 = vunpack.c.h.b16 %v368
    %v845 = vunpack.c.l.b16 %v369
    %v846 = vunpack.c.h.b16 %v369
    %v847 = vunpack.c.l.b16 %v370
    %v848 = vunpack.c.h.b16 %v370
    %v849 = vunpack.c.l.b16 %v371
    %v850 = vunpack.c.h.b16 %v371
    %v851 = vunpack.c.l.b16 %v372
    %v852 = vunpack.c.h.b16 %v372
    %v853 = vunpack.c.l.b16 %v373
    %v854 = vunpack.c.l.b16 %v374
    %v855 = vunpack.c.h.b16 %v374
    %v856 = vunpack.c.l.b16 %v375
    %v857 = vunpack.c.h.b16 %v375
    %v858 = vunpack.c.l.b16 %v376
    %v859 = vunpack.c.h.b16 %v376
    %v860 = vunpack.c.l.b16 %v377
    %v861 = vunpack.c.h.b16 %v377
    %v862 = vunpack.c.l.b16 %v378
    %v863 = vunpack.c.h.b16 %v378
    %v864 = vunpack.c.l.b16 %v379
    %v865 = vunpack.c.l.b16 %v380
    %v866 = vunpack.c.h.b16 %v380
    %v867 = vunpack.c.l.b16 %v381
    %v868 = vunpack.c.h.b16 %v381
    %v869 = vunpack.c.l.b16 %v382
    %v870 = vunpack.c.h.b16 %v382
    %v871 = vunpack.c.l.b16 %v383
    %v872 = vunpack.c.h.b16 %v383
    %v873 = vunpack.c.l.b16 %v384
    %v874 = vunpack.c.h.b16 %v384
    %v875 = vunpack.c.l.b16 %v385
    %v876 = vunpack.c.l.b16 %v386
    %v877 = vunpack.c.h.b16 %v386
    %v878 = vunpack.c.l.b16 %v387
    %v879 = vunpack.c.h.b16 %v387
    %v880 = vunpack.c.l.b16 %v388
    %v881 = vunpack.c.h.b16 %v388
    %v882 = vunpack.c.l.b16 %v389
    %v883 = vunpack.c.h.b16 %v389
    %v884 = vunpack.c.l.b16 %v390
    %v885 = vunpack.c.h.b16 %v390
    %v886 = vunpack.c.l.b16 %v391
    %v887 = vunpack.c.l.b16 %v392
    %v888 = vunpack.c.h.b16 %v392
    %v889 = vunpack.c.l.b16 %v393
    %v890 = vunpack.c.h.b16 %v393
    %v891 = vunpack.c.l.b16 %v394
    %v892 = vunpack.c.h.b16 %v394
    %v893 = vunpack.c.l.b16 %v395
    %v894 = vunpack.c.h.b16 %v395
    %v895 = vunpack.c.l.b16 %v396
    %v896 = vunpack.c.h.b16 %v396
    %v897 = vunpack.c.l.b16 %v397
    %v898 = vunpack.c.l.b16 %v398
    %v899 = vunpack.c.h.b16 %v398
    %v900 = vunpack.c.l.b16 %v399
    %v901 = vunpack.c.h.b16 %v399
    %v902 = vunpack.c.l.b16 %v400
    %v903 = vunpack.c.h.b16 %v400
    %v904 = vunpack.c.l.b16 %v401
    %v905 = vunpack.c.h.b16 %v401
    %v906 = vunpack.c.l.b16 %v402
    %v907 = vunpack.c.h.b16 %v402
    %v908 = vunpack.c.l.b16 %v403
    %v909 = vunpack.c.l.b16 %v404
    %v910 = vunpack.c.h.b16 %v404
    %v911 = vunpack.c.l.b16 %v405
    %v912 = vunpack.c.h.b16 %v405
    %v913 = vunpack.c.l.b16 %v406
    %v914 = vunpack.c.h.b16 %v406
    %v915 = vunpack.c.l.b16 %v407
    %v916 = vunpack.c.h.b16 %v407
    %v917 = vunpack.c.l.b16 %v408
    %v918 = vunpack.c.h.b16 %v408
    %v919 = vunpack.c.l.b16 %v409
    %v920 = vunpack.c.l.b16 %v410
    %v921 = vunpack.c.h.b16 %v410
    %v922 = vunpack.c.l.b16 %v411
    %v923 = vunpack.c.h.b16 %v411
    %v924 = vunpack.c.l.b16 %v412
    %v925 = vunpack.c.h.b16 %v412
    %v926 = vunpack.c.l.b16 %v413
    %v927 = vunpack.c.h.b16 %v413
    %v928 = vunpack.c.l.b16 %v414
    %v929 = vunpack.c.h.b16 %v414
    %v930 = vunpack.c.l.b16 %v415
    %v931 = vunpack.c.l.b16 %v416
    %v932 = vunpack.c.h.b16 %v416
    %v933 = vunpack.c.l.b16 %v417
    %v934 = vunpack.c.h.b16 %v417
    %v935 = vunpack.c.l.b16 %v418
    %v936 = vunpack.c.h.b16 %v418
    %v937 = vunpack.c.l.b16 %v419
    %v938 = vunpack.c.h.b16 %v419
    %v939 = vunpack.c.l.b16 %v420
    %v940 = vunpack.c.h.b16 %v420
    %v941 = vunpack.c.l.b16 %v421
    %v942 = vunpack.c.l.b16 %v422
    %v943 = vunpack.c.h.b16 %v422
    %v944 = vunpack.c.l.b16 %v423
    %v945 = vunpack.c.h.b16 %v423
    %v946 = vunpack.c.l.b16 %v424
    %v947 = vunpack.c.h.b16 %v424
    %v948 = vunpack.c.l.b16 %v425
    %v949 = vunpack.c.h.b16 %v425
    %v950 = vunpack.c.l.b16 %v426
    %v951 = vunpack.c.h.b16 %v426
    %v952 = vunpack.c.l.b16 %v427
    %v953 = vunpack.c.l.b16 %v428
    %v954 = vunpack.c.h.b16 %v428
    %v955 = vunpack.c.l.b16 %v429
    %v956 = vunpack.c.h.b16 %v429
    %v957 = vunpack.c.l.b16 %v430
    %v958 = vunpack.c.h.b16 %v430
    %v959 = vunpack.c.l.b16 %v431
    %v960 = vunpack.c.h.b16 %v431
    %v961 = vunpack.c.l.b16 %v432
    %v962 = vunpack.c.h.b16 %v432
    %v963 = vunpack.c.l.b16 %v433
    %v964 = vunpack.c.l.b16 %v434
    %v965 = vunpack.c.h.b16 %v434
    %v966 = vunpack.c.l.b16 %v435
    %v967 = vunpack.c.h.b16 %v435
    %v968 = vunpack.c.l.b16 %v436
    %v969 = vunpack.c.h.b16 %v436
    %v970 = vunpack.c.l.b16 %v437
    %v971 = vunpack.c.h.b16 %v437
    %v972 = vunpack.c.l.b16 %v438
    %v973 = vunpack.c.h.b16 %v438
    %v974 = vunpack.c.l.b16 %v439
    %v975 = vunpack.c.l.b16 %v440
    %v976 = vunpack.c.h.b16 %v440
    %v977 = vunpack.c.l.b16 %v441
    %v978 = vunpack.c.h.b16 %v441
    %v979 = vunpack.c.l.b16 %v442
    %v980 = vunpack.c.h.b16 %v442
    %v981 = vunpack.c.l.b16 %v443
    %v982 = vunpack.c.h.b16 %v443
    %v983 = vunpack.c.l.b16 %v444
    %v984 = vunpack.c.h.b16 %v444
    %v985 = vunpack.c.l.b16 %v445
    %v986 = vunpack.c.l.b16 %v446
    %v987 = vunpack.c.h.b16 %v446
    %v988 = vunpack.c.l.b16 %v447
    %v989 = vunpack.c.h.b16 %v447
    %v990 = vunpack.c.l.b16 %v448
    %v991 = vunpack.c.h.b16 %v448
    %v992 = vunpack.c.l.b16 %v449
    %v993 = vunpack.c.h.b16 %v449
    %v994 = vunpack.c.l.b16 %v450
    %v995 = vunpack.c.h.b16 %v450
    %v996 = vunpack.c.l.b16 %v451
    %v997 = vunpack.c.l.b16 %v452
    %v998 = vunpack.c.h.b16 %v452
    %v999 = vunpack.c.l.b16 %v453
    %v1000 = vunpack.c.h.b16 %v453
    %v1001 = vunpack.c.l.b16 %v454
    %v1002 = vunpack.c.h.b16 %v454
    %v1003 = vunpack.c.l.b16 %v455
    %v1004 = vunpack.c.h.b16 %v455
    %v1005 = vunpack.c.l.b16 %v456
    %v1006 = vunpack.c.h.b16 %v456
    %v1007 = vunpack.c.l.b16 %v457
    %v1008 = vunpack.c.l.b16 %v458
    %v1009 = vunpack.c.h.b16 %v458
    %v1010 = vunpack.c.l.b16 %v459
    %v1011 = vunpack.c.h.b16 %v459
    %v1012 = vunpack.c.l.b16 %v460
    %v1013 = vunpack.c.h.b16 %v460
    %v1014 = vunpack.c.l.b16 %v461
    %v1015 = vunpack.c.h.b16 %v461
    %v1016 = vunpack.c.l.b16 %v462
    %v1017 = vunpack.c.h.b16 %v462
    %v1018 = vunpack.c.l.b16 %v463
    %v1019 = vpack.c.b16 %v678, %v667
    %v1020 = vpack.c.b16 %v679, %v668
    %v1021 = vpack.c.b16 %v680, %v669
    %v1022 = vpack.c.b16 %v681, %v670
    %v1023 = vpack.c.b16 %v682, %v671
    %v1024 = vpack.c.b16 %v683, %v672
    %v1025 = vpack.c.b16 %v684, %v673
    %v1026 = vpack.c.b16 %v685, %v674
    %v1027 = vpack.c.b16 %v686, %v675
    %v1028 = vpack.c.b16 %v687, %v676
    %v1029 = vpack.c.b16 %v688, %v677
    %v1030 = vpack.c.b16 %v700, %v689
    %v1031 = vpack.c.b16 %v701, %v690
    %v1032 = vpack.c.b16 %v702, %v691
    %v1033 = vpack.c.b16 %v703, %v692
    %v1034 = vpack.c.b16 %v704, %v693
    %v1035 = vpack.c.b16 %v705, %v694
    %v1036 = vpack.c.b16 %v706, %v695
    %v1037 = vpack.c.b16 %v707, %v696
    %v1038 = vpack.c.b16 %v708, %v697
    %v1039 = vpack.c.b16 %v709, %v698
    %v1040 = vpack.c.b16 %v710, %v699
    %v1041 = vpack.c.b16 %v722, %v711
    %v1042 = vpack.c.b16 %v723, %v712
    %v1043 = vpack.c.b16 %v724, %v713
    %v1044 = vpack.c.b16 %v725, %v714
    %v1045 = vpack.c.b16 %v726, %v715
    %v1046 = vpack.c.b16 %v727, %v716
    %v1047 = vpack.c.b16 %v728, %v717
    %v1048 = vpack.c.b16 %v729, %v718
    %v1049 = vpack.c.b16 %v730, %v719
    %v1050 = vpack.c.b16 %v731, %v720
    %v1051 = vpack.c.b16 %v732, %v721
    %v1052 = vpack.c.b16 %v744, %v733
    %v1053 = vpack.c.b16 %v745, %v734
    %v1054 = vpack.c.b16 %v746, %v735
    %v1055 = vpack.c.b16 %v747, %v736
    %v1056 = vpack.c.b16 %v748, %v737
    %v1057 = vpack.c.b16 %v749, %v738
    %v1058 = vpack.c.b16 %v750, %v739
    %v1059 = vpack.c.b16 %v751, %v740
    %v1060 = vpack.c.b16 %v752, %v741
    %v1061 = vpack.c.b16 %v753, %v742
    %v1062 = vpack.c.b16 %v754, %v743
    %v1063 = vpack.c.b16 %v766, %v755
    %v1064 = vpack.c.b16 %v767, %v756
    %v1065 = vpack.c.b16 %v768, %v757
    %v1066 = vpack.c.b16 %v769, %v758
    %v1067 = vpack.c.b16 %v770, %v759
    %v1068 = vpack.c.b16 %v771, %v760
    %v1069 = vpack.c.b16 %v772, %v761
    %v1070 = vpack.c.b16 %v773, %v762
    %v1071 = vpack.c.b16 %v774, %v763
    %v1072 = vpack.c.b16 %v775, %v764
    %v1073 = vpack.c.b16 %v776, %v765
    %v1074 = vpack.c.b16 %v788, %v777
    %v1075 = vpack.c.b16 %v789, %v778
    %v1076 = vpack.c.b16 %v790, %v779
    %v1077 = vpack.c.b16 %v791, %v780
    %v1078 = vpack.c.b16 %v792, %v781
    %v1079 = vpack.c.b16 %v793, %v782
    %v1080 = vpack.c.b16 %v794, %v783
    %v1081 = vpack.c.b16 %v795, %v784
    %v1082 = vpack.c.b16 %v796, %v785
    %v1083 = vpack.c.b16 %v797, %v786
    %v1084 = vpack.c.b16 %v798, %v787
    %v1085 = vpack.c.b16 %v810, %v799
    %v1086 = vpack.c.b16 %v811, %v800
    %v1087 = vpack.c.b16 %v812, %v801
    %v1088 = vpack.c.b16 %v813, %v802
    %v1089 = vpack.c.b16 %v814, %v803
    %v1090 = vpack.c.b16 %v815, %v804
    %v1091 = vpack.c.b16 %v816, %v805
    %v1092 = vpack.c.b16 %v817, %v806
    %v1093 = vpack.c.b16 %v818, %v807
    %v1094 = vpack.c.b16 %v819, %v808
    %v1095 = vpack.c.b16 %v820, %v809
    %v1096 = vpack.c.b16 %v832, %v821
    %v1097 = vpack.c.b16 %v833, %v822
    %v1098 = vpack.c.b16 %v834, %v823
    %v1099 = vpack.c.b16 %v835, %v824
    %v1100 = vpack.c.b16 %v836, %v825
    %v1101 = vpack.c.b16 %v837, %v826
    %v1102 = vpack.c.b16 %v838, %v827
    %v1103 = vpack.c.b16 %v839, %v828
    %v1104 = vpack.c.b16 %v840, %v829
    %v1105 = vpack.c.b16 %v841, %v830
    %v1106 = vpack.c.b16 %v842, %v831
    %v1107 = vpack.c.b16 %v854, %v843
    %v1108 = vpack.c.b16 %v855, %v844
    %v1109 = vpack.c.b16 %v856, %v845
    %v1110 = vpack.c.b16 %v857, %v846
    %v1111 = vpack.c.b16 %v858, %v847
    %v1112 = vpack.c.b16 %v859, %v848
    %v1113 = vpack.c.b16 %v860, %v849
    %v1114 = vpack.c.b16 %v861, %v850
    %v1115 = vpack.c.b16 %v862, %v851
    %v1116 = vpack.c.b16 %v863, %v852
    %v1117 = vpack.c.b16 %v864, %v853
    %v1118 = vpack.c.b16 %v876, %v865
    %v1119 = vpack.c.b16 %v877, %v866
    %v1120 = vpack.c.b16 %v878, %v867
    %v1121 = vpack.c.b16 %v879, %v868
    %v1122 = vpack.c.b16 %v880, %v869
    %v1123 = vpack.c.b16 %v881, %v870
    %v1124 = vpack.c.b16 %v882, %v871
    %v1125 = vpack.c.b16 %v883, %v872
    %v1126 = vpack.c.b16 %v884, %v873
    %v1127 = vpack.c.b16 %v885, %v874
    %v1128 = vpack.c.b16 %v886, %v875
    %v1129 = vpack.c.b16 %v898, %v887
    %v1130 = vpack.c.b16 %v899, %v888
    %v1131 = vpack.c.b16 %v900, %v889
    %v1132 = vpack.c.b16 %v901, %v890
    %v1133 = vpack.c.b16 %v902, %v891
    %v1134 = vpack.c.b16 %v903, %v892
    %v1135 = vpack.c.b16 %v904, %v893
    %v1136 = vpack.c.b16 %v905, %v894
    %v1137 = vpack.c.b16 %v906, %v895
    %v1138 = vpack.c.b16 %v907, %v896
    %v1139 = vpack.c.b16 %v908, %v897
    %v1140 = vpack.c.b16 %v920, %v909
    %v1141 = vpack.c.b16 %v921, %v910
    %v1142 = vpack.c.b16 %v922, %v911
    %v1143 = vpack.c.b16 %v923, %v912
    %v1144 = vpack.c.b16 %v924, %v913
    %v1145 = vpack.c.b16 %v925, %v914
    %v1146 = vpack.c.b16 %v926, %v915
    %v1147 = vpack.c.b16 %v927, %v916
    %v1148 = vpack.c.b16 %v928, %v917
    %v1149 = vpack.c.b16 %v929, %v918
    %v1150 = vpack.c.b16 %v930, %v919
    %v1151 = vpack.c.b16 %v942, %v931
    %v1152 = vpack.c.b16 %v943, %v932
    %v1153 = vpack.c.b16 %v944, %v933
    %v1154 = vpack.c.b16 %v945, %v934
    %v1155 = vpack.c.b16 %v946, %v935
    %v1156 = vpack.c.b16 %v947, %v936
    %v1157 = vpack.c.b16 %v948, %v937
    %v1158 = vpack.c.b16 %v949, %v938
    %v1159 = vpack.c.b16 %v950, %v939
    %v1160 = vpack.c.b16 %v951, %v940
    %v1161 = vpack.c.b16 %v952, %v941
    %v1162 = vpack.c.b16 %v964, %v953
    %v1163 = vpack.c.b16 %v965, %v954
    %v1164 = vpack.c.b16 %v966, %v955
    %v1165 = vpack.c.b16 %v967, %v956
    %v1166 = vpack.c.b16 %v968, %v957
    %v1167 = vpack.c.b16 %v969, %v958
    %v1168 = vpack.c.b16 %v970, %v959
    %v1169 = vpack.c.b16 %v971, %v960
    %v1170 = vpack.c.b16 %v972, %v961
    %v1171 = vpack.c.b16 %v973, %v962
    %v1172 = vpack.c.b16 %v974, %v963
    %v1173 = vpack.c.b16 %v986, %v975
    %v1174 = vpack.c.b16 %v987, %v976
    %v1175 = vpack.c.b16 %v988, %v977
    %v1176 = vpack.c.b16 %v989, %v978
    %v1177 = vpack.c.b16 %v990, %v979
    %v1178 = vpack.c.b16 %v991, %v980
    %v1179 = vpack.c.b16 %v992, %v981
    %v1180 = vpack.c.b16 %v993, %v982
    %v1181 = vpack.c.b16 %v994, %v983
    %v1182 = vpack.c.b16 %v995, %v984
    %v1183 = vpack.c.b16 %v996, %v985
    %v1184 = vpack.c.b16 %v1008, %v997
    %v1185 = vpack.c.b16 %v1009, %v998
    %v1186 = vpack.c.b16 %v1010, %v999
    %v1187 = vpack.c.b16 %v1011, %v1000
    %v1188 = vpack.c.b16 %v1012, %v1001
    %v1189 = vpack.c.b16 %v1013, %v1002
    %v1190 = vpack.c.b16 %v1014, %v1003
    %v1191 = vpack.c.b16 %v1015, %v1004
    %v1192 = vpack.c.b16 %v1016, %v1005
    %v1193 = vpack.c.b16 %v1017, %v1006
    %v1194 = vpack.c.b16 %v1018, %v1007
    %1371 = vmatpush.bf16.msra.mxu0 %v1096
    %1372 = vmatpush.bf16.msra.mxu0 %v1085
    %1373 = vmatpush.bf16.msra.mxu0 %v1074
    %1374 = vmatpush.bf16.msra.mxu0 %v1063
    %1375 = vmatpush.bf16.msra.mxu0 %v1052
    %1376 = vmatpush.bf16.msra.mxu0 %v1041
    %1377 = vmatpush.bf16.msra.mxu0 %v1030
    %1378 = vmatpush.bf16.msra.mxu0 %v1019
    %1379 = vmatmul.bf16.gmra.mxu0 %v270
    %v1380 = vpop.f32.mrf.mxu0
    %v1381 = vadd.f32 %v464, %v1380
    %v1382 = vpop.f32.mrf.mxu0
    %1383 = vdwg.mxu0
    %1384 = vmatpush.bf16.msra.mxu0 %v1184
    %1385 = vmatpush.bf16.msra.mxu0 %v1173
    %1386 = vmatpush.bf16.msra.mxu0 %v1162
    %1387 = vmatpush.bf16.msra.mxu0 %v1151
    %1388 = vmatpush.bf16.msra.mxu0 %v1140
    %1389 = vmatpush.bf16.msra.mxu0 %v1129
    %1390 = vmatpush.bf16.msra.mxu0 %v1118
    %1391 = vmatpush.bf16.msra.mxu0 %v1107
    %1392 = vmatmul.bf16.gmra.mxu0 %v271
    %v1393 = vpop.f32.mrf.mxu0
    %v1394 = vadd.f32 %v1381, %v1393
    %v1395 = vpop.f32.mrf.mxu0
    %1396 = vdwg.mxu0
    %1397 = vmatpush.bf16.msra.mxu0 %v1097
    %1398 = vmatpush.bf16.msra.mxu0 %v1086
    %1399 = vmatpush.bf16.msra.mxu0 %v1075
    %1400 = vmatpush.bf16.msra.mxu0 %v1064
    %1401 = vmatpush.bf16.msra.mxu0 %v1053
    %1402 = vmatpush.bf16.msra.mxu0 %v1042
    %1403 = vmatpush.bf16.msra.mxu0 %v1031
    %1404 = vmatpush.bf16.msra.mxu0 %v1020
    %1405 = vmatmul.bf16.gmra.mxu0 %v270
    %v1406 = vpop.f32.mrf.mxu0
    %v1407 = vadd.f32 %v465, %v1406
    %v1408 = vpop.f32.mrf.mxu0
    %1409 = vdwg.mxu0
    %1410 = vmatpush.bf16.msra.mxu0 %v1185
    %1411 = vmatpush.bf16.msra.mxu0 %v1174
    %1412 = vmatpush.bf16.msra.mxu0 %v1163
    %1413 = vmatpush.bf16.msra.mxu0 %v1152
    %1414 = vmatpush.bf16.msra.mxu0 %v1141
    %1415 = vmatpush.bf16.msra.mxu0 %v1130
    %1416 = vmatpush.bf16.msra.mxu0 %v1119
    %1417 = vmatpush.bf16.msra.mxu0 %v1108
    %1418 = vmatmul.bf16.gmra.mxu0 %v271
    %v1419 = vpop.f32.mrf.mxu0
    %v1420 = vadd.f32 %v1407, %v1419
    %v1421 = vpop.f32.mrf.mxu0
    %1422 = vdwg.mxu0
    %1423 = vmatpush.bf16.msra.mxu0 %v1098
    %1424 = vmatpush.bf16.msra.mxu0 %v1087
    %1425 = vmatpush.bf16.msra.mxu0 %v1076
    %1426 = vmatpush.bf16.msra.mxu0 %v1065
    %1427 = vmatpush.bf16.msra.mxu0 %v1054
    %1428 = vmatpush.bf16.msra.mxu0 %v1043
    %1429 = vmatpush.bf16.msra.mxu0 %v1032
    %1430 = vmatpush.bf16.msra.mxu0 %v1021
    %1431 = vmatmul.bf16.gmra.mxu0 %v270
    %v1432 = vpop.f32.mrf.mxu0
    %v1433 = vadd.f32 %v466, %v1432
    %v1434 = vpop.f32.mrf.mxu0
    %1435 = vdwg.mxu0
    %1436 = vmatpush.bf16.msra.mxu0 %v1186
    %1437 = vmatpush.bf16.msra.mxu0 %v1175
    %1438 = vmatpush.bf16.msra.mxu0 %v1164
    %1439 = vmatpush.bf16.msra.mxu0 %v1153
    %1440 = vmatpush.bf16.msra.mxu0 %v1142
    %1441 = vmatpush.bf16.msra.mxu0 %v1131
    %1442 = vmatpush.bf16.msra.mxu0 %v1120
    %1443 = vmatpush.bf16.msra.mxu0 %v1109
    %1444 = vmatmul.bf16.gmra.mxu0 %v271
    %v1445 = vpop.f32.mrf.mxu0
    %v1446 = vadd.f32 %v1433, %v1445
    %v1447 = vpop.f32.mrf.mxu0
    %1448 = vdwg.mxu0
    %1449 = vmatpush.bf16.msra.mxu0 %v1099
    %1450 = vmatpush.bf16.msra.mxu0 %v1088
    %1451 = vmatpush.bf16.msra.mxu0 %v1077
    %1452 = vmatpush.bf16.msra.mxu0 %v1066
    %1453 = vmatpush.bf16.msra.mxu0 %v1055
    %1454 = vmatpush.bf16.msra.mxu0 %v1044
    %1455 = vmatpush.bf16.msra.mxu0 %v1033
    %1456 = vmatpush.bf16.msra.mxu0 %v1022
    %1457 = vmatmul.bf16.gmra.mxu0 %v270
    %v1458 = vpop.f32.mrf.mxu0
    %v1459 = vadd.f32 %v467, %v1458
    %v1460 = vpop.f32.mrf.mxu0
    %1461 = vdwg.mxu0
    %1462 = vmatpush.bf16.msra.mxu0 %v1187
    %1463 = vmatpush.bf16.msra.mxu0 %v1176
    %1464 = vmatpush.bf16.msra.mxu0 %v1165
    %1465 = vmatpush.bf16.msra.mxu0 %v1154
    %1466 = vmatpush.bf16.msra.mxu0 %v1143
    %1467 = vmatpush.bf16.msra.mxu0 %v1132
    %1468 = vmatpush.bf16.msra.mxu0 %v1121
    %1469 = vmatpush.bf16.msra.mxu0 %v1110
    %1470 = vmatmul.bf16.gmra.mxu0 %v271
    %v1471 = vpop.f32.mrf.mxu0
    %v1472 = vadd.f32 %v1459, %v1471
    %v1473 = vpop.f32.mrf.mxu0
    %1474 = vdwg.mxu0
    %1475 = vmatpush.bf16.msra.mxu0 %v1100
    %1476 = vmatpush.bf16.msra.mxu0 %v1089
    %1477 = vmatpush.bf16.msra.mxu0 %v1078
    %1478 = vmatpush.bf16.msra.mxu0 %v1067
    %1479 = vmatpush.bf16.msra.mxu0 %v1056
    %1480 = vmatpush.bf16.msra.mxu0 %v1045
    %1481 = vmatpush.bf16.msra.mxu0 %v1034
    %1482 = vmatpush.bf16.msra.mxu0 %v1023
    %1483 = vmatmul.bf16.gmra.mxu0 %v270
    %v1484 = vpop.f32.mrf.mxu0
    %v1485 = vadd.f32 %v468, %v1484
    %v1486 = vpop.f32.mrf.mxu0
    %1487 = vdwg.mxu0
    %1488 = vmatpush.bf16.msra.mxu0 %v1188
    %1489 = vmatpush.bf16.msra.mxu0 %v1177
    %1490 = vmatpush.bf16.msra.mxu0 %v1166
    %1491 = vmatpush.bf16.msra.mxu0 %v1155
    %1492 = vmatpush.bf16.msra.mxu0 %v1144
    %1493 = vmatpush.bf16.msra.mxu0 %v1133
    %1494 = vmatpush.bf16.msra.mxu0 %v1122
    %1495 = vmatpush.bf16.msra.mxu0 %v1111
    %1496 = vmatmul.bf16.gmra.mxu0 %v271
    %v1497 = vpop.f32.mrf.mxu0
    %v1498 = vadd.f32 %v1485, %v1497
    %v1499 = vpop.f32.mrf.mxu0
    %1500 = vdwg.mxu0
    %1501 = vmatpush.bf16.msra.mxu0 %v1101
    %1502 = vmatpush.bf16.msra.mxu0 %v1090
    %1503 = vmatpush.bf16.msra.mxu0 %v1079
    %1504 = vmatpush.bf16.msra.mxu0 %v1068
    %1505 = vmatpush.bf16.msra.mxu0 %v1057
    %1506 = vmatpush.bf16.msra.mxu0 %v1046
    %1507 = vmatpush.bf16.msra.mxu0 %v1035
    %1508 = vmatpush.bf16.msra.mxu0 %v1024
    %1509 = vmatmul.bf16.gmra.mxu0 %v270
    %v1510 = vpop.f32.mrf.mxu0
    %v1511 = vadd.f32 %v469, %v1510
    %v1512 = vpop.f32.mrf.mxu0
    %1513 = vdwg.mxu0
    %1514 = vmatpush.bf16.msra.mxu0 %v1189
    %1515 = vmatpush.bf16.msra.mxu0 %v1178
    %1516 = vmatpush.bf16.msra.mxu0 %v1167
    %1517 = vmatpush.bf16.msra.mxu0 %v1156
    %1518 = vmatpush.bf16.msra.mxu0 %v1145
    %1519 = vmatpush.bf16.msra.mxu0 %v1134
    %1520 = vmatpush.bf16.msra.mxu0 %v1123
    %1521 = vmatpush.bf16.msra.mxu0 %v1112
    %1522 = vmatmul.bf16.gmra.mxu0 %v271
    %v1523 = vpop.f32.mrf.mxu0
    %v1524 = vadd.f32 %v1511, %v1523
    %v1525 = vpop.f32.mrf.mxu0
    %1526 = vdwg.mxu0
    %1527 = vmatpush.bf16.msra.mxu0 %v1102
    %1528 = vmatpush.bf16.msra.mxu0 %v1091
    %1529 = vmatpush.bf16.msra.mxu0 %v1080
    %1530 = vmatpush.bf16.msra.mxu0 %v1069
    %1531 = vmatpush.bf16.msra.mxu0 %v1058
    %1532 = vmatpush.bf16.msra.mxu0 %v1047
    %1533 = vmatpush.bf16.msra.mxu0 %v1036
    %1534 = vmatpush.bf16.msra.mxu0 %v1025
    %1535 = vmatmul.bf16.gmra.mxu0 %v270
    %v1536 = vpop.f32.mrf.mxu0
    %v1537 = vadd.f32 %v470, %v1536
    %v1538 = vpop.f32.mrf.mxu0
    %1539 = vdwg.mxu0
    %1540 = vmatpush.bf16.msra.mxu0 %v1190
    %1541 = vmatpush.bf16.msra.mxu0 %v1179
    %1542 = vmatpush.bf16.msra.mxu0 %v1168
    %1543 = vmatpush.bf16.msra.mxu0 %v1157
    %1544 = vmatpush.bf16.msra.mxu0 %v1146
    %1545 = vmatpush.bf16.msra.mxu0 %v1135
    %1546 = vmatpush.bf16.msra.mxu0 %v1124
    %1547 = vmatpush.bf16.msra.mxu0 %v1113
    %1548 = vmatmul.bf16.gmra.mxu0 %v271
    %v1549 = vpop.f32.mrf.mxu0
    %v1550 = vadd.f32 %v1537, %v1549
    %v1551 = vpop.f32.mrf.mxu0
    %1552 = vdwg.mxu0
    %1553 = vmatpush.bf16.msra.mxu0 %v1103
    %1554 = vmatpush.bf16.msra.mxu0 %v1092
    %1555 = vmatpush.bf16.msra.mxu0 %v1081
    %1556 = vmatpush.bf16.msra.mxu0 %v1070
    %1557 = vmatpush.bf16.msra.mxu0 %v1059
    %1558 = vmatpush.bf16.msra.mxu0 %v1048
    %1559 = vmatpush.bf16.msra.mxu0 %v1037
    %1560 = vmatpush.bf16.msra.mxu0 %v1026
    %1561 = vmatmul.bf16.gmra.mxu0 %v270
    %v1562 = vpop.f32.mrf.mxu0
    %v1563 = vadd.f32 %v471, %v1562
    %v1564 = vpop.f32.mrf.mxu0
    %1565 = vdwg.mxu0
    %1566 = vmatpush.bf16.msra.mxu0 %v1191
    %1567 = vmatpush.bf16.msra.mxu0 %v1180
    %1568 = vmatpush.bf16.msra.mxu0 %v1169
    %1569 = vmatpush.bf16.msra.mxu0 %v1158
    %1570 = vmatpush.bf16.msra.mxu0 %v1147
    %1571 = vmatpush.bf16.msra.mxu0 %v1136
    %1572 = vmatpush.bf16.msra.mxu0 %v1125
    %1573 = vmatpush.bf16.msra.mxu0 %v1114
    %1574 = vmatmul.bf16.gmra.mxu0 %v271
    %v1575 = vpop.f32.mrf.mxu0
    %v1576 = vadd.f32 %v1563, %v1575
    %v1577 = vpop.f32.mrf.mxu0
    %1578 = vdwg.mxu0
    %1579 = vmatpush.bf16.msra.mxu0 %v1104
    %1580 = vmatpush.bf16.msra.mxu0 %v1093
    %1581 = vmatpush.bf16.msra.mxu0 %v1082
    %1582 = vmatpush.bf16.msra.mxu0 %v1071
    %1583 = vmatpush.bf16.msra.mxu0 %v1060
    %1584 = vmatpush.bf16.msra.mxu0 %v1049
    %1585 = vmatpush.bf16.msra.mxu0 %v1038
    %1586 = vmatpush.bf16.msra.mxu0 %v1027
    %1587 = vmatmul.bf16.gmra.mxu0 %v270
    %v1588 = vpop.f32.mrf.mxu0
    %v1589 = vadd.f32 %v472, %v1588
    %v1590 = vpop.f32.mrf.mxu0
    %1591 = vdwg.mxu0
    %1592 = vmatpush.bf16.msra.mxu0 %v1192
    %1593 = vmatpush.bf16.msra.mxu0 %v1181
    %1594 = vmatpush.bf16.msra.mxu0 %v1170
    %1595 = vmatpush.bf16.msra.mxu0 %v1159
    %1596 = vmatpush.bf16.msra.mxu0 %v1148
    %1597 = vmatpush.bf16.msra.mxu0 %v1137
    %1598 = vmatpush.bf16.msra.mxu0 %v1126
    %1599 = vmatpush.bf16.msra.mxu0 %v1115
    %1600 = vmatmul.bf16.gmra.mxu0 %v271
    %v1601 = vpop.f32.mrf.mxu0
    %v1602 = vadd.f32 %v1589, %v1601
    %v1603 = vpop.f32.mrf.mxu0
    %1604 = vdwg.mxu0
    %1605 = vmatpush.bf16.msra.mxu0 %v1105
    %1606 = vmatpush.bf16.msra.mxu0 %v1094
    %1607 = vmatpush.bf16.msra.mxu0 %v1083
    %1608 = vmatpush.bf16.msra.mxu0 %v1072
    %1609 = vmatpush.bf16.msra.mxu0 %v1061
    %1610 = vmatpush.bf16.msra.mxu0 %v1050
    %1611 = vmatpush.bf16.msra.mxu0 %v1039
    %1612 = vmatpush.bf16.msra.mxu0 %v1028
    %1613 = vmatmul.bf16.gmra.mxu0 %v270
    %v1614 = vpop.f32.mrf.mxu0
    %v1615 = vadd.f32 %v473, %v1614
    %v1616 = vpop.f32.mrf.mxu0
    %1617 = vdwg.mxu0
    %1618 = vmatpush.bf16.msra.mxu0 %v1193
    %1619 = vmatpush.bf16.msra.mxu0 %v1182
    %1620 = vmatpush.bf16.msra.mxu0 %v1171
    %1621 = vmatpush.bf16.msra.mxu0 %v1160
    %1622 = vmatpush.bf16.msra.mxu0 %v1149
    %1623 = vmatpush.bf16.msra.mxu0 %v1138
    %1624 = vmatpush.bf16.msra.mxu0 %v1127
    %1625 = vmatpush.bf16.msra.mxu0 %v1116
    %1626 = vmatmul.bf16.gmra.mxu0 %v271
    %v1627 = vpop.f32.mrf.mxu0
    %v1628 = vadd.f32 %v1615, %v1627
    %v1629 = vpop.f32.mrf.mxu0
    %1630 = vdwg.mxu0
    %1631 = vmatpush.bf16.msra.mxu0 %v1106
    %1632 = vmatpush.bf16.msra.mxu0 %v1095
    %1633 = vmatpush.bf16.msra.mxu0 %v1084
    %1634 = vmatpush.bf16.msra.mxu0 %v1073
    %1635 = vmatpush.bf16.msra.mxu0 %v1062
    %1636 = vmatpush.bf16.msra.mxu0 %v1051
    %1637 = vmatpush.bf16.msra.mxu0 %v1040
    %1638 = vmatpush.bf16.msra.mxu0 %v1029
    %1639 = vmatmul.bf16.gmra.mxu0 %v270
    %v1640 = vpop.f32.mrf.mxu0
    %v1641 = vadd.f32 %v474, %v1640
    %v1642 = vpop.f32.mrf.mxu0
    %1643 = vdwg.mxu0
    %1644 = vmatpush.bf16.msra.mxu0 %v1194
    %1645 = vmatpush.bf16.msra.mxu0 %v1183
    %1646 = vmatpush.bf16.msra.mxu0 %v1172
    %1647 = vmatpush.bf16.msra.mxu0 %v1161
    %1648 = vmatpush.bf16.msra.mxu0 %v1150
    %1649 = vmatpush.bf16.msra.mxu0 %v1139
    %1650 = vmatpush.bf16.msra.mxu0 %v1128
    %1651 = vmatpush.bf16.msra.mxu0 %v1117
    %1652 = vmatmul.bf16.gmra.mxu0 %v271
    %v1653 = vpop.f32.mrf.mxu0
    %v1654 = vadd.f32 %v1641, %v1653
    %v1655 = vpop.f32.mrf.mxu0
    %1656 = vdwg.mxu0
    %1657 = vst [vmem:[#allocation2] sm:$0xff] %v1394
    %vm1658 = vcmask 392192
    %1659 = vst.msk [vmem:[#allocation2 + $0x8] sm:$0xff] %vm1658, %v1420
    %1662 = vrot.lane.b32.xlu0 %v1420, 80
    %v1663 = vpop.permute.xlu0 %1662
    %1664 = vrot.lane.b32.xlu0 %v1446, 80
    %v1665 = vpop.permute.xlu0 %1664
    %vm1666 = vcmask 654336
    %v1667 = vsel %vm1666, %v1663, %v1665
    %1670 = vst [vmem:[#allocation2 + $0x10] sm:$0xff] %v1667
    %1671 = vst.msk [vmem:[#allocation2 + $0x18] sm:$0xff] %vm1658, %v1665
    %1674 = vrot.lane.b32.xlu0 %v1446, 32
    %v1675 = vpop.permute.xlu0 %1674
    %1676 = vrot.lane.b32.xlu0 %v1472, 32
    %v1677 = vpop.permute.xlu0 %1676
    %1678 = vrot.lane.b32.xlu0 %v1498, 32
    %v1679 = vpop.permute.xlu0 %1678
    %v1680 = vsel %vm220, %v1675, %v1677
    %v1681 = vsel %vm220, %v1677, %v1679
    %1684 = vst [vmem:[#allocation2 + $0x20] sm:$0xff] %v1680
    %1685 = vst.msk [vmem:[#allocation2 + $0x28] sm:$0xff] %vm1658, %v1681
    %1687 = vrot.lane.b32.xlu0 %v1498, 112
    %v1688 = vpop.permute.xlu0 %1687
    %1689 = vrot.lane.b32.xlu0 %v1524, 112
    %v1690 = vpop.permute.xlu0 %1689
    %vm1691 = vcmask 916480
    %v1692 = vsel %vm1691, %v1688, %v1690
    %1695 = vst [vmem:[#allocation2 + $0x30] sm:$0xff] %v1692
    %1696 = vst.msk [vmem:[#allocation2 + $0x38] sm:$0xff] %vm1658, %v1690
    %1698 = vrot.lane.b32.xlu0 %v1524, 64
    %v1699 = vpop.permute.xlu0 %1698
    %1700 = vrot.lane.b32.xlu0 %v1550, 64
    %v1701 = vpop.permute.xlu0 %1700
    %v1702 = vsel %vm160, %v1699, %v1701
    %1705 = vst [vmem:[#allocation2 + $0x40] sm:$0xff] %v1702
    %1706 = vst.msk [vmem:[#allocation2 + $0x48] sm:$0xff] %vm1658, %v1701
    %1709 = vrot.lane.b32.xlu0 %v1550, 16
    %v1710 = vpop.permute.xlu0 %1709
    %1711 = vrot.lane.b32.xlu0 %v1576, 16
    %v1712 = vpop.permute.xlu0 %1711
    %1713 = vrot.lane.b32.xlu0 %v1602, 16
    %v1714 = vpop.permute.xlu0 %1713
    %vm1715 = vcmask 130048
    %v1716 = vsel %vm1715, %v1710, %v1712
    %v1717 = vsel %vm1715, %v1712, %v1714
    %1720 = vst [vmem:[#allocation2 + $0x50] sm:$0xff] %v1716
    %1721 = vst.msk [vmem:[#allocation2 + $0x58] sm:$0xff] %vm1658, %v1717
    %1723 = vrot.lane.b32.xlu0 %v1602, 96
    %v1724 = vpop.permute.xlu0 %1723
    %1725 = vrot.lane.b32.xlu0 %v1628, 96
    %v1726 = vpop.permute.xlu0 %1725
    %vm1727 = vcmask 785408
    %v1728 = vsel %vm1727, %v1724, %v1726
    %1731 = vst [vmem:[#allocation2 + $0x60] sm:$0xff] %v1728
    %1732 = vst.msk [vmem:[#allocation2 + $0x68] sm:$0xff] %vm1658, %v1726
    %1734 = vrot.lane.b32.xlu0 %v1628, 48
    %v1735 = vpop.permute.xlu0 %1734
    %1736 = vrot.lane.b32.xlu0 %v1654, 48
    %v1737 = vpop.permute.xlu0 %1736
    %v1738 = vsel %vm1658, %v1735, %v1737
    %1741 = vst [vmem:[#allocation2 + $0x70] sm:$0xff] %v1738
    %1742 = vst.msk [vmem:[#allocation2 + $0x78] sm:$0xff] %vm1658, %v1737
    %v1743 = vld [vmem:[#allocation2] sm:$0xff]
    %v1744 = vld [vmem:[#allocation2 + $0x10] sm:$0xff]
    %v1745 = vld [vmem:[#allocation2 + $0x20] sm:$0xff]
    %v1746 = vld [vmem:[#allocation2 + $0x30] sm:$0xff]
    %v1747 = vld [vmem:[#allocation2 + $0x40] sm:$0xff]
    %v1748 = vld [vmem:[#allocation2 + $0x50] sm:$0xff]
    %v1749 = vld [vmem:[#allocation2 + $0x60] sm:$0xff]
    %v1750 = vld [vmem:[#allocation2 + $0x70] sm:$0xff]
    %v1751 = vld [vmem:[#allocation2 + $0x8] sm:$0xff]
    %v1752 = vld [vmem:[#allocation2 + $0x18] sm:$0xff]
    %v1753 = vld [vmem:[#allocation2 + $0x28] sm:$0xff]
    %v1754 = vld [vmem:[#allocation2 + $0x38] sm:$0xff]
    %v1755 = vld [vmem:[#allocation2 + $0x48] sm:$0xff]
    %v1756 = vld [vmem:[#allocation2 + $0x58] sm:$0xff]
    %v1757 = vld [vmem:[#allocation2 + $0x68] sm:$0xff]
    %v1758 = vld [vmem:[#allocation2 + $0x78] sm:$0xff]
    %v1759 = vld [vmem:[#allocation14] sm:$0xff]
    %v1760 = vperm.slane %v242, 0
    %v1761 = vmul.f32 %v1759, %v1760
    %v1762 = vperm.slane %v262, 0
    %1765 = vrot.lane.b32.xlu0 %v1760, 48
    %v1766 = vpop.permute.xlu0 %1765
    %1767 = vrot.lane.b32.xlu0 %v1762, 48
    %v1768 = vpop.permute.xlu0 %1767
    %v1769 = vsel %vm1658, %v1766, %v1768
    %v1772 = vsel %vm160, %v1761, 0
    %1774 = vmatpush.msra.mxu0 0.0
    %1775 = vmatpush.msra.mxu0 0.0
    %1776 = vmatpush.msra.mxu0 0.0
    %1777 = vmatpush.msra.mxu0 0.0
    %1778 = vmatpush.msra.mxu0 0.0
    %1779 = vmatpush.msra.mxu0 0.0
    %1780 = vmatpush.msra.mxu0 0.0
    %1781 = vmatpush.msra.mxu0 0.0
    %1782 = vmatpush.msra.mxu0 %v1750
    %1783 = vmatpush.msra.mxu0 %v1749
    %1784 = vmatpush.msra.mxu0 %v1748
    %1785 = vmatpush.msra.mxu0 %v1747
    %1786 = vmatpush.msra.mxu0 %v1746
    %1787 = vmatpush.msra.mxu0 %v1745
    %1788 = vmatpush.msra.mxu0 %v1744
    %1789 = vmatpush.msra.mxu0 %v1743
    %1790 = vmatmul.f32.gmra.mxu0 %v1772
    %v1791 = vpop.f32.mrf.mxu0
    %v1792 = vadd.f32 %v1769, %v1791
    %1793 = vdwg.mxu0
    %v1794 = vmul.f32 %v1792, 0.5
    %v1795 = vmul.f32 %v1792, 0.044715
    %v1796 = vmul.f32 %v1795, %v1792
    %v1797 = vmul.f32 %v1796, %v1792
    %v1798 = vadd.f32 %v1792, %v1797
    %v1799 = vmul.f32 %v1798, 0.7978846
    %v1800 = vtanh.pop %v1799
    %v1801 = vadd.f32 %v1800, 1.0
    %v1802 = vmul.f32 %v1794, %v1801
    %1803 = vrot.lane.b32.xlu0 %v1762, 112
    %v1804 = vpop.permute.xlu0 %1803
    %v1807 = vsel %vm160, %v1802, 0
    %1809 = vmatpush.msra.mxu0 0.0
    %1810 = vmatpush.msra.mxu0 0.0
    %1811 = vmatpush.msra.mxu0 0.0
    %1812 = vmatpush.msra.mxu0 0.0
    %1813 = vmatpush.msra.mxu0 0.0
    %1814 = vmatpush.msra.mxu0 0.0
    %1815 = vmatpush.msra.mxu0 0.0
    %1816 = vmatpush.msra.mxu0 0.0
    %1817 = vmatpush.msra.mxu0 %v1758
    %1818 = vmatpush.msra.mxu0 %v1757
    %1819 = vmatpush.msra.mxu0 %v1756
    %1820 = vmatpush.msra.mxu0 %v1755
    %1821 = vmatpush.msra.mxu0 %v1754
    %1822 = vmatpush.msra.mxu0 %v1753
    %1823 = vmatpush.msra.mxu0 %v1752
    %1824 = vmatpush.msra.mxu0 %v1751
    %1825 = vmatmul.f32.gmra.mxu0 %v1807
    %v1826 = vpop.f32.mrf.mxu0
    %v1827 = vadd.f32 %v1804, %v1826
    %1828 = vdwg.mxu0
    %v1829 = vmul.f32 %v1827, 0.5
    %v1830 = vmul.f32 %v1827, 0.044715
    %v1831 = vmul.f32 %v1830, %v1827
    %v1832 = vmul.f32 %v1831, %v1827
    %v1833 = vadd.f32 %v1827, %v1832
    %v1834 = vmul.f32 %v1833, 0.7978846
    %v1835 = vtanh.pop %v1834
    %v1836 = vadd.f32 %v1835, 1.0
    %v1837 = vmul.f32 %v1829, %v1836
    %1842 = vrot.lane.b32.xlu0 %v1743, 64
    %v1843 = vpop.permute.xlu0 %1842
    %1844 = vrot.lane.b32.xlu0 %v1744, 64
    %v1845 = vpop.permute.xlu0 %1844
    %1846 = vrot.lane.b32.xlu0 %v1745, 64
    %v1847 = vpop.permute.xlu0 %1846
    %1848 = vrot.lane.b32.xlu0 %v1746, 64
    %v1849 = vpop.permute.xlu0 %1848
    %1854 = vrot.lane.b32.xlu0 %v1762, 80
    %v1855 = vpop.permute.xlu0 %1854
    %v1858 = vsel %vm220, %v1837, 0
    %1860 = vmatpush.msra.mxu0 0.0
    %1861 = vmatpush.msra.mxu0 0.0
    %1862 = vmatpush.msra.mxu0 0.0
    %1863 = vmatpush.msra.mxu0 0.0
    %1864 = vmatpush.msra.mxu0 0.0
    %1865 = vmatpush.msra.mxu0 0.0
    %1866 = vmatpush.msra.mxu0 0.0
    %1867 = vmatpush.msra.mxu0 0.0
    %1868 = vmatpush.msra.mxu0 0.0
    %1869 = vmatpush.msra.mxu0 0.0
    %1870 = vmatpush.msra.mxu0 0.0
    %1871 = vmatpush.msra.mxu0 0.0
    %1872 = vmatpush.msra.mxu0 %v1849
    %1873 = vmatpush.msra.mxu0 %v1847
    %1874 = vmatpush.msra.mxu0 %v1845
    %1875 = vmatpush.msra.mxu0 %v1843
    %1876 = vmatmul.f32.gmra.mxu0 %v1858
    %v1877 = vpop.f32.mrf.mxu0
    %v1878 = vadd.f32 %v1855, %v1877
    %1879 = vdwg.mxu0
    %v1880 = vmul.f32 %v1878, 0.5
    %v1881 = vmul.f32 %v1878, 0.044715
    %v1882 = vmul.f32 %v1881, %v1878
    %v1883 = vmul.f32 %v1882, %v1878
    %v1884 = vadd.f32 %v1878, %v1883
    %v1885 = vmul.f32 %v1884, 0.7978846
    %v1886 = vtanh.pop %v1885
    %v1887 = vadd.f32 %v1886, 1.0
    %v1888 = vmul.f32 %v1880, %v1887
    %v1889 = vadd.f32 %v1888, %v1802
    %1898 = vrot.lane.b32.xlu0 %v1751, 96
    %v1899 = vpop.permute.xlu0 %1898
    %1900 = vrot.lane.b32.xlu0 %v1752, 96
    %v1901 = vpop.permute.xlu0 %1900
    %1902 = vrot.lane.b32.xlu0 %v1753, 96
    %v1903 = vpop.permute.xlu0 %1902
    %1904 = vrot.lane.b32.xlu0 %v1754, 96
    %v1905 = vpop.permute.xlu0 %1904
    %1906 = vrot.lane.b32.xlu0 %v1755, 96
    %v1907 = vpop.permute.xlu0 %1906
    %1908 = vrot.lane.b32.xlu0 %v1756, 96
    %v1909 = vpop.permute.xlu0 %1908
    %1910 = vrot.lane.b32.xlu0 %v1757, 96
    %v1911 = vpop.permute.xlu0 %1910
    %1912 = vrot.lane.b32.xlu0 %v1758, 96
    %v1913 = vpop.permute.xlu0 %1912
    %1922 = vrot.lane.b32.xlu0 %v1762, 16
    %v1923 = vpop.permute.xlu0 %1922
    %v1926 = vsel %vm160, %v1889, 0
    %1928 = vmatpush.msra.mxu0 0.0
    %1929 = vmatpush.msra.mxu0 0.0
    %1930 = vmatpush.msra.mxu0 0.0
    %1931 = vmatpush.msra.mxu0 0.0
    %1932 = vmatpush.msra.mxu0 0.0
    %1933 = vmatpush.msra.mxu0 0.0
    %1934 = vmatpush.msra.mxu0 0.0
    %1935 = vmatpush.msra.mxu0 0.0
    %1936 = vmatpush.msra.mxu0 %v1913
    %1937 = vmatpush.msra.mxu0 %v1911
    %1938 = vmatpush.msra.mxu0 %v1909
    %1939 = vmatpush.msra.mxu0 %v1907
    %1940 = vmatpush.msra.mxu0 %v1905
    %1941 = vmatpush.msra.mxu0 %v1903
    %1942 = vmatpush.msra.mxu0 %v1901
    %1943 = vmatpush.msra.mxu0 %v1899
    %1944 = vmatmul.f32.gmra.mxu0 %v1926
    %v1945 = vpop.f32.mrf.mxu0
    %v1946 = vadd.f32 %v1923, %v1945
    %1947 = vdwg.mxu0
    %v1948 = vmul.f32 %v1946, 0.5
    %v1949 = vmul.f32 %v1946, 0.044715
    %v1950 = vmul.f32 %v1949, %v1946
    %v1951 = vmul.f32 %v1950, %v1946
    %v1952 = vadd.f32 %v1946, %v1951
    %v1953 = vmul.f32 %v1952, 0.7978846
    %v1954 = vtanh.pop %v1953
    %v1955 = vadd.f32 %v1954, 1.0
    %v1956 = vmul.f32 %v1948, %v1955
    %1957 = vst.msk [vmem:[#allocation15] sm:$0xff] %vm1715, %v1956
    %1959 = vrot.lane.b32.xlu0 %v242, 64
    %v1960 = vpop.permute.xlu0 %1959
    %vm1962 = vcmask 122880
    %1963 = vst.msk [vmem:[#allocation16] sm:$0x1] %vm1962, %v1960
    // Predicated region
    $region66: #{hypermem_forward.1} parent=1 // pred_check
      _
    $region67: #{hypermem_forward.1} parent=1 // pred_check_branch
      %1965 = sbr.rel (0) target = $region69
    $region68: #{hypermem_forward.1} parent=1 // pred_region
      %1967 = vsyncadd [#allocation5], 0
      %s1969 = sshll.u32 [#allocation15], 4
      %s1970 = int_to_ptr.vmem [resolvable:$true] %s1969
      %s1971 = sshll.u32 %s9, 4
      %s1972 = int_to_ptr.hbm [resolvable:$true] %s1971
      %1974 = dma.vmem_to_hbm [thread:$0]  %s1970, 128, %s1972, [#allocation5]
    $region69: #{hypermem_forward.1} parent=1 // pred_fallthru
      _
    // Predicated region
    $region70: #{hypermem_forward.1} parent=1 // pred_check
      _
    $region71: #{hypermem_forward.1} parent=1 // pred_check_branch
      %1976 = sbr.rel (0) target = $region73
    $region72: #{hypermem_forward.1} parent=1 // pred_region
      %1978 = vsyncadd [#allocation17], 0
      %s1980 = sshll.u32 [#allocation16], 4
      %s1981 = int_to_ptr.vmem [resolvable:$true] %s1980
      %s1982 = sshll.u32 %s10, 4
      %s1983 = int_to_ptr.hbm [resolvable:$true] %s1982
      %1985 = dma.vmem_to_hbm [thread:$0]  %s1981, 16, %s1983, [#allocation17]
    $region73: #{hypermem_forward.1} parent=1 // pred_fallthru
      _
    // Predicated region
    $region74: #{hypermem_forward.1} parent=1 // pred_check
      _
    $region75: #{hypermem_forward.1} parent=1 // pred_check_branch
      %1987 = sbr.rel (0) target = $region77
    $region76: #{hypermem_forward.1} parent=1 // pred_region
      %1989 = dma.done [#allocation5], 128
    $region77: #{hypermem_forward.1} parent=1 // pred_fallthru
      _
    // Predicated region
    $region78: #{hypermem_forward.1} parent=1 // pred_check
      _
    $region79: #{hypermem_forward.1} parent=1 // pred_check_branch
      %1991 = sbr.rel (0) target = $region81
    $region80: #{hypermem_forward.1} parent=1 // pred_region
      %1993 = dma.done [#allocation17], 16
    $region81: #{hypermem_forward.1} parent=1 // pred_fallthru
      _
    %1994 = vsyncpa [#allocation4], 1
    %1995 = vsyncpa [#allocation7], 1
    %1996 = vsyncpa [#allocation10], 1
    %1997 = vsyncpa [#allocation13], 1
    %1998 = vsyncpa [#allocation5], 1
    %1999 = vsyncpa [#allocation17], 1

</llo_original>
